<compile_context>
chip_gen: v7x
topology: tpu7x:2x2x1
jax: 0.10.0
libtpu: 0.0.40
codegen_flags: <defaults>
</compile_context>

<pallas_src>
import functools

import jax
import jax.numpy as jnp
from jax.experimental import pallas as pl
from jax.experimental.pallas import tpu as pltpu

LEAKY_ALPHA = 0.2  # negative slope used by the FeSoG GAT layer


def fesog_forward_kernel(fs_ref, ni_ref, wcat_ref, avec_ref, c1_ref, relsc_ref,
                         out_ref, *, n_neighbor):
    """One grid step handles a (TB, ...) block of users.

    fs_ref   : (TB, D)        bf16  raw self features
    ni_ref   : (TB, N+M, D)   bf16  stacked [neighbors ; items]
    wcat_ref : (D, 2D)        bf16  [W_n | W_i]
    avec_ref : (4, D)         f32   rows = [a_n[:D], a_n[D:], a_i[:D], a_i[D:]]
    c1_ref   : (1, D)         f32   c[:D]
    relsc_ref: (3,)           f32   SMEM, [c[D:].rel_n, c[D:].rel_i, c[D:].rel_s]
    out_ref  : (TB, D)        f32
    """
    N = n_neighbor
    fs_bf = fs_ref[...]                              # (TB, D)   bf16
    ni = ni_ref[...]                                 # (TB, NM, D) bf16
    wcat = wcat_ref[...]                             # (D, 2D)   bf16
    TB, D = fs_bf.shape
    NM = ni.shape[1]

    # Fused MXU dots against [W_n | W_i]; bf16 operands, f32 accumulation.
    # (TB*NM, D) reshape is tile-aligned when N+M is a multiple of 16 (bf16).
    wh_self = jnp.dot(fs_bf, wcat, preferred_element_type=jnp.float32)   # (TB, 2D)
    wh_ni = jnp.dot(ni.reshape(TB * NM, D), wcat,
                    preferred_element_type=jnp.float32).reshape(TB, NM, 2 * D)

    avec = avec_ref[...]                             # (4, D) f32
    c1 = c1_ref[...]                                 # (1, D) f32

    def gat(wh_s, wh_n3, a1, a2):
        # Attention scores: VPU multiply + lane (XLU) reduce instead of
        # width-1 MXU dots.
        s_self = jnp.sum(wh_s * a1, axis=-1, keepdims=True)             # (TB, 1)
        s_nbr = jnp.sum(wh_n3 * a2[None], axis=-1)                      # (TB, K)
        e = s_self + s_nbr
        e = jnp.where(e > 0, e, LEAKY_ALPHA * e)                         # leaky relu
        e = e - jnp.max(e, axis=-1, keepdims=True)
        p = jnp.exp(e)
        att = p / jnp.sum(p, axis=-1, keepdims=True)                     # (TB, K)
        # Weighted aggregation of the transformed neighbor embeddings.
        return jnp.sum(att[:, :, None] * wh_n3, axis=1)                  # (TB, D)

    # Neighbor branch uses the W_n half, item branch the W_i half.
    f_n = gat(wh_self[:, :D], wh_ni[:, :N, :D], avec[0:1], avec[1:2])
    f_i = gat(wh_self[:, D:], wh_ni[:, N:, D:], avec[2:3], avec[3:4])

    fs = fs_bf.astype(jnp.float32)

    # Gating: e_x = c[:D].f_x + c[D:].relation_x (second term precomputed,
    # read as scalars from SMEM).
    e_n = jnp.sum(f_n * c1, axis=-1, keepdims=True) + relsc_ref[0]       # (TB, 1)
    e_i = jnp.sum(f_i * c1, axis=-1, keepdims=True) + relsc_ref[1]
    e_s = jnp.sum(fs * c1, axis=-1, keepdims=True) + relsc_ref[2]

    # Softmax over the 3 stacked scores (r_n, r_i, r_s), per user.
    m = jnp.maximum(jnp.maximum(e_n, e_i), e_s)
    pn = jnp.exp(e_n - m)
    pi_ = jnp.exp(e_i - m)
    ps = jnp.exp(e_s - m)
    z = pn + pi_ + ps

    # Padded (all-zero) batch rows produce finite values everywhere and are
    # sliced off in the wrapper, so they are harmless.
    out_ref[...] = ((ps * fs + pn * f_n + pi_ * f_i) / z).astype(out_ref.dtype)


def fesog_forward_batched(feature_self, feature_neighbor, feature_item, params,
                          *, user_block=256):
    """feature_self: (B, D), feature_neighbor: (B, N, D), feature_item: (B, M, D)."""
    B, D = feature_self.shape
    N = feature_neighbor.shape[1]
    M = feature_item.shape[1]

    # User block: multiple of 16 keeps bf16 (16,128) tiles aligned; clamp to
    # the (padded) batch so tiny batches don't over-pad.  For real batches
    # keep TB large (256-1024) so the MXU and DMA pipeline stay busy, and
    # pick TB so the grid has >=2 steps on v7x (2 TensorCores).
    TB = max(16, ((min(user_block, B) + 15) // 16) * 16)
    B_pad = ((B + TB - 1) // TB) * TB
    if B_pad != B:
        pad = B_pad - B
        feature_self = jnp.pad(feature_self, ((0, pad), (0, 0)))
        feature_neighbor = jnp.pad(feature_neighbor, ((0, pad), (0, 0), (0, 0)))
        feature_item = jnp.pad(feature_item, ((0, pad), (0, 0), (0, 0)))

    # Pre-stack neighbor + item rows into one input stream (layout plumbing
    # done once by XLA, not per grid step inside the kernel).
    ni = jnp.concatenate([feature_neighbor, feature_item], axis=1)       # (B_pad, N+M, D)

    # bf16 feature / weight operands for the MXU; accumulation stays f32.
    fs_bf = feature_self.astype(jnp.bfloat16)
    ni_bf = ni.astype(jnp.bfloat16)
    w_cat = jnp.concatenate([params["W_n"], params["W_i"]],
                            axis=1).astype(jnp.bfloat16)                 # (D, 2D)

    a_n = params["a_n"].astype(jnp.float32)
    a_i = params["a_i"].astype(jnp.float32)
    avec = jnp.stack([a_n[:D], a_n[D:], a_i[:D], a_i[D:]], axis=0)       # (4, D) f32
    c = params["c"].astype(jnp.float32)
    c1 = c[:D].reshape(1, D)                                             # (1, D) f32
    # Grid-invariant relation scores, hoisted out of the kernel (3 scalars).
    rel_sc = jnp.stack([
        jnp.dot(c[D:], params["relation_neighbor"].astype(jnp.float32)),
        jnp.dot(c[D:], params["relation_item"].astype(jnp.float32)),
        jnp.dot(c[D:], params["relation_self"].astype(jnp.float32)),
    ]).astype(jnp.float32)                                               # (3,)

    const2 = lambda i: (0, 0)   # weights/params stay VMEM-resident across steps
    kernel = functools.partial(fesog_forward_kernel, n_neighbor=N)

    out = pl.pallas_call(
        kernel,
        out_shape=jax.ShapeDtypeStruct((B_pad, D), jnp.float32),
        grid=(B_pad // TB,),
        in_specs=[
            pl.BlockSpec((TB, D), lambda i: (i, 0)),             # self features (bf16)
            pl.BlockSpec((TB, N + M, D), lambda i: (i, 0, 0)),   # stacked neighbors+items (bf16)
            pl.BlockSpec((D, 2 * D), const2),                    # [W_n | W_i] (bf16)
            pl.BlockSpec((4, D), const2),                        # attention vectors
            pl.BlockSpec((1, D), const2),                        # c[:D]
            pl.BlockSpec(memory_space=pltpu.MemorySpace.SMEM),   # relation scores (3,)
        ],
        out_specs=pl.BlockSpec((TB, D), lambda i: (i, 0)),
        compiler_params=pltpu.CompilerParams(
            dimension_semantics=("parallel",),      # megacore sharding on v7x
            # Above the v5e(16MiB)/v6e(32MiB) scoped defaults, below v7x's
            # 64 MiB physical VMEM; leaves room for TB up to ~1024.
            vmem_limit_bytes=48 * 1024 * 1024,
        ),
    )(fs_bf, ni_bf, w_cat, avec, c1, rel_sc)
    return out[:B]


def fesog_forward_single(feature_self, feature_neighbor, feature_item, params):
    """Single-user API matching the PyTorch forward: (D,), (N, D), (M, D) -> (D,)."""
    out = fesog_forward_batched(feature_self[None],
                                feature_neighbor[None],
                                feature_item[None], params)
    return out[0]


def fesog_forward_ref_single(feature_self, feature_neighbor, feature_item, params):
    """Pure-JAX f32 reference mirroring the PyTorch forward (one user)."""
    D = feature_self.shape[-1]

    def gat(nbr, W, a):
        wh_s = feature_self @ W
        wh_n = nbr @ W
        e = wh_s @ a[:D] + wh_n @ a[D:]
        e = jnp.where(e > 0, e, LEAKY_ALPHA * e)
        att = jax.nn.softmax(e)
        return att @ wh_n

    f_n = gat(feature_neighbor, params["W_n"], params["a_n"])
    f_i = gat(feature_item, params["W_i"], params["a_i"])
    c = params["c"]
    e_n = c @ jnp.concatenate([f_n, params["relation_neighbor"]])
    e_i = c @ jnp.concatenate([f_i, params["relation_item"]])
    e_s = c @ jnp.concatenate([feature_self, params["relation_self"]])
    r = jax.nn.softmax(jnp.stack([e_n, e_i, e_s]))
    return r[2] * feature_self + r[0] * f_n + r[1] * f_i


def init_params(key, embed_size):
    ks = jax.random.split(key, 8)
    D = embed_size
    return {
        # GAT_neighbor
        "W_n": jax.random.normal(ks[0], (D, D), jnp.float32) * 0.1,
        "a_n": jax.random.normal(ks[1], (2 * D,), jnp.float32) * 0.1,
        # GAT_item
        "W_i": jax.random.normal(ks[2], (D, D), jnp.float32) * 0.1,
        "a_i": jax.random.normal(ks[3], (2 * D,), jnp.float32) * 0.1,
        # relation params + gating vector (torch.randn in the module)
        "relation_neighbor": jax.random.normal(ks[4], (D,), jnp.float32),
        "relation_item": jax.random.normal(ks[5], (D,), jnp.float32),
        "relation_self": jax.random.normal(ks[6], (D,), jnp.float32),
        "c": jax.random.normal(ks[7], (2 * D,), jnp.float32),
    }


if __name__ == "__main__":
    D = 128       # embed_size (lane-dense)
    N = 8         # num social neighbors per user
    M = 8         # num interacted items per user
    B = 64        # batch of users

    key = jax.random.PRNGKey(0)
    kp, k1, k2, k3 = jax.random.split(key, 4)
    params = init_params(kp, D)

    feature_self = jax.random.normal(k1, (B, D), jnp.float32)
    feature_neighbor = jax.random.normal(k2, (B, N, D), jnp.float32)
    feature_item = jax.random.normal(k3, (B, M, D), jnp.float32)

    # The kernel feeds the MXU bf16 operands; pre-round the big tensors so the
    # f32 reference sees the same values (accumulation stays f32 in both).
    bf_round = lambda t: t.astype(jnp.bfloat16).astype(jnp.float32)
    feature_self = bf_round(feature_self)
    feature_neighbor = bf_round(feature_neighbor)
    feature_item = bf_round(feature_item)
    params["W_n"] = bf_round(params["W_n"])
    params["W_i"] = bf_round(params["W_i"])

    # Batched kernel (user_block=32 -> a 2-step grid at this small demo size;
    # production batches should use the default user_block=256+).
    out = fesog_forward_batched(feature_self, feature_neighbor, feature_item,
                                params, user_block=32)
    out = jax.block_until_ready(out)
    assert out.shape == (B, D)

    # Pure-JAX reference (per user, vmapped).
    ref = jax.vmap(fesog_forward_ref_single, in_axes=(0, 0, 0, None))(
        feature_self, feature_neighbor, feature_item, params)
    assert jnp.allclose(out, ref, atol=1e-2, rtol=1e-2), (
        float(jnp.max(jnp.abs(out - ref))))

    # Single-user API (exercises the batch-padding path).
    out1 = fesog_forward_single(feature_self[0], feature_neighbor[0],
                                feature_item[0], params)
    out1 = jax.block_until_ready(out1)
    ref1 = fesog_forward_ref_single(feature_self[0], feature_neighbor[0],
                                    feature_item[0], params)
    assert out1.shape == (D,)
    assert jnp.allclose(out1, ref1, atol=1e-2, rtol=1e-2), (
        float(jnp.max(jnp.abs(out1 - ref1))))

    print("KERNEL_OK")
</pallas_src>

<mosaic_0001>
module attributes {stable_mosaic.version = 11 : i64} {
  func.func @fesog_forward_kernel(%arg0: i32, %arg1: memref<32x128xbf16, #tpu.memory_space<vmem>>, %arg2: memref<32x16x128xbf16, #tpu.memory_space<vmem>>, %arg3: memref<128x256xbf16, #tpu.memory_space<vmem>>, %arg4: memref<4x128xf32, #tpu.memory_space<vmem>>, %arg5: memref<1x128xf32, #tpu.memory_space<vmem>>, %arg6: memref<3xf32, #tpu.memory_space<smem>>, %arg7: memref<32x128xf32, #tpu.memory_space<vmem>>) attributes {dimension_semantics = [#tpu.dimension_semantics<parallel>], iteration_bounds = array<i64: 2>, scalar_prefetch = 0 : i64, scratch_operands = 0 : i64, tpu.core_type = #tpu.core_type<tc>, window_params = [{transform_indices = @transform_0, window_bounds = array<i64: 32, 128>}, {transform_indices = @transform_1, window_bounds = array<i64: 32, 16, 128>}, {pipeline_mode = #tpu.pipeline_mode<synchronous>, transform_indices = @transform_2, window_bounds = array<i64: 128, 256>}, {pipeline_mode = #tpu.pipeline_mode<synchronous>, transform_indices = @transform_3, window_bounds = array<i64: 4, 128>}, {pipeline_mode = #tpu.pipeline_mode<synchronous>, transform_indices = @transform_4, window_bounds = array<i64: 1, 128>}, {transform_indices = @transform_5, window_bounds = array<i64: 3>}, {transform_indices = @transform_6, window_bounds = array<i64: 32, 128>}]} {
    %c0 = arith.constant 0 : index
    %c0_0 = arith.constant 0 : index
    %0 = vector.load %arg1[%c0, %c0_0] : memref<32x128xbf16, #tpu.memory_space<vmem>>, vector<32x128xbf16>
    %c0_1 = arith.constant 0 : index
    %c0_2 = arith.constant 0 : index
    %c0_3 = arith.constant 0 : index
    %1 = vector.load %arg2[%c0_1, %c0_2, %c0_3] : memref<32x16x128xbf16, #tpu.memory_space<vmem>>, vector<32x16x128xbf16>
    %c0_4 = arith.constant 0 : index
    %c0_5 = arith.constant 0 : index
    %2 = vector.load %arg3[%c0_4, %c0_5] : memref<128x256xbf16, #tpu.memory_space<vmem>>, vector<128x256xbf16>
    %cst = arith.constant dense<0.000000e+00> : vector<32x256xf32>
    %3 = tpu.matmul %0, %2, %cst {dimension_numbers = #tpu.dot_dimension_numbers<[1], [0], [0], [1], [0, 0, 1, 1], [], []>} : vector<32x128xbf16>, vector<128x256xbf16>, vector<32x256xf32> -> vector<32x256xf32>
    %4 = vector.shape_cast %1 : vector<32x16x128xbf16> to vector<512x128xbf16>
    %cst_6 = arith.constant dense<0.000000e+00> : vector<512x256xf32>
    %5 = tpu.matmul %4, %2, %cst_6 {dimension_numbers = #tpu.dot_dimension_numbers<[1], [0], [0], [1], [0, 0, 1, 1], [], []>} : vector<512x128xbf16>, vector<128x256xbf16>, vector<512x256xf32> -> vector<512x256xf32>
    %6 = vector.shape_cast %5 : vector<512x256xf32> to vector<32x16x256xf32>
    %c0_7 = arith.constant 0 : index
    %c0_8 = arith.constant 0 : index
    %7 = vector.load %arg4[%c0_7, %c0_8] : memref<4x128xf32, #tpu.memory_space<vmem>>, vector<4x128xf32>
    %c0_9 = arith.constant 0 : index
    %c0_10 = arith.constant 0 : index
    %8 = vector.load %arg5[%c0_9, %c0_10] : memref<1x128xf32, #tpu.memory_space<vmem>>, vector<1x128xf32>
    %9 = vector.extract_strided_slice %3 {offsets = [0, 0], sizes = [32, 128], strides = [1, 1]} : vector<32x256xf32> to vector<32x128xf32>
    %10 = vector.extract_strided_slice %6 {offsets = [0, 0, 0], sizes = [32, 8, 128], strides = [1, 1, 1]} : vector<32x16x256xf32> to vector<32x8x128xf32>
    %11 = vector.extract_strided_slice %7 {offsets = [0, 0], sizes = [1, 128], strides = [1, 1]} : vector<4x128xf32> to vector<1x128xf32>
    %12 = vector.extract_strided_slice %7 {offsets = [1, 0], sizes = [1, 128], strides = [1, 1]} : vector<4x128xf32> to vector<1x128xf32>
    %13 = vector.broadcast %11 : vector<1x128xf32> to vector<32x128xf32>
    %14 = arith.mulf %9, %13 : vector<32x128xf32>
    %cst_11 = arith.constant dense<0.000000e+00> : vector<32xf32>
    %15 = vector.multi_reduction <add>, %14, %cst_11 [1] : vector<32x128xf32> to vector<32xf32>
    %16 = vector.shape_cast %15 : vector<32xf32> to vector<32x1xf32>
    %17 = vector.shape_cast %12 : vector<1x128xf32> to vector<1x1x128xf32>
    %18 = vector.broadcast %17 : vector<1x1x128xf32> to vector<32x8x128xf32>
    %19 = arith.mulf %10, %18 : vector<32x8x128xf32>
    %cst_12 = arith.constant dense<0.000000e+00> : vector<32x8xf32>
    %20 = vector.multi_reduction <add>, %19, %cst_12 [2] : vector<32x8x128xf32> to vector<32x8xf32>
    %21 = vector.broadcast %16 : vector<32x1xf32> to vector<32x8xf32>
    %22 = arith.addf %21, %20 : vector<32x8xf32>
    %cst_13 = arith.constant 0.000000e+00 : f32
    %23 = vector.broadcast %cst_13 : f32 to vector<32x8xf32>
    %24 = arith.cmpf ogt, %22, %23 : vector<32x8xf32>
    %cst_14 = arith.constant 2.000000e-01 : f32
    %25 = vector.broadcast %cst_14 : f32 to vector<32x8xf32>
    %26 = arith.mulf %25, %22 : vector<32x8xf32>
    %27 = arith.select %24, %22, %26 : vector<32x8xi1>, vector<32x8xf32>
    %cst_15 = arith.constant dense<0xFF800000> : vector<32xf32>
    %28 = vector.multi_reduction <maximumf>, %27, %cst_15 [1] : vector<32x8xf32> to vector<32xf32>
    %29 = vector.shape_cast %28 : vector<32xf32> to vector<32x1xf32>
    %30 = vector.broadcast %29 : vector<32x1xf32> to vector<32x8xf32>
    %31 = arith.subf %27, %30 : vector<32x8xf32>
    %32 = math.exp %31 : vector<32x8xf32>
    %cst_16 = arith.constant dense<0.000000e+00> : vector<32xf32>
    %33 = vector.multi_reduction <add>, %32, %cst_16 [1] : vector<32x8xf32> to vector<32xf32>
    %34 = vector.shape_cast %33 : vector<32xf32> to vector<32x1xf32>
    %35 = vector.broadcast %34 : vector<32x1xf32> to vector<32x8xf32>
    %36 = arith.divf %32, %35 : vector<32x8xf32>
    %37 = vector.shape_cast %36 : vector<32x8xf32> to vector<32x8x1xf32>
    %38 = vector.broadcast %37 : vector<32x8x1xf32> to vector<32x8x128xf32>
    %39 = arith.mulf %38, %10 : vector<32x8x128xf32>
    %cst_17 = arith.constant dense<0.000000e+00> : vector<32x128xf32>
    %40 = vector.multi_reduction <add>, %39, %cst_17 [1] : vector<32x8x128xf32> to vector<32x128xf32>
    %41 = vector.extract_strided_slice %3 {offsets = [0, 128], sizes = [32, 128], strides = [1, 1]} : vector<32x256xf32> to vector<32x128xf32>
    %42 = vector.extract_strided_slice %6 {offsets = [0, 8, 128], sizes = [32, 8, 128], strides = [1, 1, 1]} : vector<32x16x256xf32> to vector<32x8x128xf32>
    %43 = vector.extract_strided_slice %7 {offsets = [2, 0], sizes = [1, 128], strides = [1, 1]} : vector<4x128xf32> to vector<1x128xf32>
    %44 = vector.extract_strided_slice %7 {offsets = [3, 0], sizes = [1, 128], strides = [1, 1]} : vector<4x128xf32> to vector<1x128xf32>
    %45 = vector.broadcast %43 : vector<1x128xf32> to vector<32x128xf32>
    %46 = arith.mulf %41, %45 : vector<32x128xf32>
    %cst_18 = arith.constant dense<0.000000e+00> : vector<32xf32>
    %47 = vector.multi_reduction <add>, %46, %cst_18 [1] : vector<32x128xf32> to vector<32xf32>
    %48 = vector.shape_cast %47 : vector<32xf32> to vector<32x1xf32>
    %49 = vector.shape_cast %44 : vector<1x128xf32> to vector<1x1x128xf32>
    %50 = vector.broadcast %49 : vector<1x1x128xf32> to vector<32x8x128xf32>
    %51 = arith.mulf %42, %50 : vector<32x8x128xf32>
    %cst_19 = arith.constant dense<0.000000e+00> : vector<32x8xf32>
    %52 = vector.multi_reduction <add>, %51, %cst_19 [2] : vector<32x8x128xf32> to vector<32x8xf32>
    %53 = vector.broadcast %48 : vector<32x1xf32> to vector<32x8xf32>
    %54 = arith.addf %53, %52 : vector<32x8xf32>
    %cst_20 = arith.constant 0.000000e+00 : f32
    %55 = vector.broadcast %cst_20 : f32 to vector<32x8xf32>
    %56 = arith.cmpf ogt, %54, %55 : vector<32x8xf32>
    %cst_21 = arith.constant 2.000000e-01 : f32
    %57 = vector.broadcast %cst_21 : f32 to vector<32x8xf32>
    %58 = arith.mulf %57, %54 : vector<32x8xf32>
    %59 = arith.select %56, %54, %58 : vector<32x8xi1>, vector<32x8xf32>
    %cst_22 = arith.constant dense<0xFF800000> : vector<32xf32>
    %60 = vector.multi_reduction <maximumf>, %59, %cst_22 [1] : vector<32x8xf32> to vector<32xf32>
    %61 = vector.shape_cast %60 : vector<32xf32> to vector<32x1xf32>
    %62 = vector.broadcast %61 : vector<32x1xf32> to vector<32x8xf32>
    %63 = arith.subf %59, %62 : vector<32x8xf32>
    %64 = math.exp %63 : vector<32x8xf32>
    %cst_23 = arith.constant dense<0.000000e+00> : vector<32xf32>
    %65 = vector.multi_reduction <add>, %64, %cst_23 [1] : vector<32x8xf32> to vector<32xf32>
    %66 = vector.shape_cast %65 : vector<32xf32> to vector<32x1xf32>
    %67 = vector.broadcast %66 : vector<32x1xf32> to vector<32x8xf32>
    %68 = arith.divf %64, %67 : vector<32x8xf32>
    %69 = vector.shape_cast %68 : vector<32x8xf32> to vector<32x8x1xf32>
    %70 = vector.broadcast %69 : vector<32x8x1xf32> to vector<32x8x128xf32>
    %71 = arith.mulf %70, %42 : vector<32x8x128xf32>
    %cst_24 = arith.constant dense<0.000000e+00> : vector<32x128xf32>
    %72 = vector.multi_reduction <add>, %71, %cst_24 [1] : vector<32x8x128xf32> to vector<32x128xf32>
    %73 = arith.extf %0 : vector<32x128xbf16> to vector<32x128xf32>
    %74 = vector.broadcast %8 : vector<1x128xf32> to vector<32x128xf32>
    %75 = arith.mulf %40, %74 : vector<32x128xf32>
    %cst_25 = arith.constant dense<0.000000e+00> : vector<32xf32>
    %76 = vector.multi_reduction <add>, %75, %cst_25 [1] : vector<32x128xf32> to vector<32xf32>
    %77 = vector.shape_cast %76 : vector<32xf32> to vector<32x1xf32>
    %c0_26 = arith.constant 0 : index
    %78 = memref.load %arg6[%c0_26] : memref<3xf32, #tpu.memory_space<smem>>
    %79 = vector.broadcast %78 : f32 to vector<32x1xf32>
    %80 = arith.addf %77, %79 : vector<32x1xf32>
    %81 = vector.broadcast %8 : vector<1x128xf32> to vector<32x128xf32>
    %82 = arith.mulf %72, %81 : vector<32x128xf32>
    %cst_27 = arith.constant dense<0.000000e+00> : vector<32xf32>
    %83 = vector.multi_reduction <add>, %82, %cst_27 [1] : vector<32x128xf32> to vector<32xf32>
    %84 = vector.shape_cast %83 : vector<32xf32> to vector<32x1xf32>
    %c1 = arith.constant 1 : index
    %85 = memref.load %arg6[%c1] : memref<3xf32, #tpu.memory_space<smem>>
    %86 = vector.broadcast %85 : f32 to vector<32x1xf32>
    %87 = arith.addf %84, %86 : vector<32x1xf32>
    %88 = vector.broadcast %8 : vector<1x128xf32> to vector<32x128xf32>
    %89 = arith.mulf %73, %88 : vector<32x128xf32>
    %cst_28 = arith.constant dense<0.000000e+00> : vector<32xf32>
    %90 = vector.multi_reduction <add>, %89, %cst_28 [1] : vector<32x128xf32> to vector<32xf32>
    %91 = vector.shape_cast %90 : vector<32xf32> to vector<32x1xf32>
    %c2 = arith.constant 2 : index
    %92 = memref.load %arg6[%c2] : memref<3xf32, #tpu.memory_space<smem>>
    %93 = vector.broadcast %92 : f32 to vector<32x1xf32>
    %94 = arith.addf %91, %93 : vector<32x1xf32>
    %95 = arith.maximumf %80, %87 : vector<32x1xf32>
    %96 = arith.maximumf %95, %94 : vector<32x1xf32>
    %97 = arith.subf %80, %96 : vector<32x1xf32>
    %98 = math.exp %97 : vector<32x1xf32>
    %99 = arith.subf %87, %96 : vector<32x1xf32>
    %100 = math.exp %99 : vector<32x1xf32>
    %101 = arith.subf %94, %96 : vector<32x1xf32>
    %102 = math.exp %101 : vector<32x1xf32>
    %103 = arith.addf %98, %100 : vector<32x1xf32>
    %104 = arith.addf %103, %102 : vector<32x1xf32>
    %105 = vector.broadcast %102 : vector<32x1xf32> to vector<32x128xf32>
    %106 = arith.mulf %105, %73 : vector<32x128xf32>
    %107 = vector.broadcast %98 : vector<32x1xf32> to vector<32x128xf32>
    %108 = arith.mulf %107, %40 : vector<32x128xf32>
    %109 = arith.addf %106, %108 : vector<32x128xf32>
    %110 = vector.broadcast %100 : vector<32x1xf32> to vector<32x128xf32>
    %111 = arith.mulf %110, %72 : vector<32x128xf32>
    %112 = arith.addf %109, %111 : vector<32x128xf32>
    %113 = vector.broadcast %104 : vector<32x1xf32> to vector<32x128xf32>
    %114 = arith.divf %112, %113 : vector<32x128xf32>
    %c0_29 = arith.constant 0 : index
    %c0_30 = arith.constant 0 : index
    %115 = vector.load %arg7[%c0_29, %c0_30] : memref<32x128xf32, #tpu.memory_space<vmem>>, vector<32x128xf32>
    tpu.vector_store %arg7[%c0_29, %c0_30], %114 {strides = array<i32>} : memref<32x128xf32, #tpu.memory_space<vmem>>, vector<32x128xf32>,
    return
  }
  func.func @transform_0(%arg0: i32) -> (i32, i32) {
    %c0_i32 = arith.constant 0 : i32
    %c0_i32_0 = arith.constant 0 : i32
    return %arg0, %c0_i32 : i32, i32
  }
  func.func @transform_1(%arg0: i32) -> (i32, i32, i32) {
    %c0_i32 = arith.constant 0 : i32
    %c0_i32_0 = arith.constant 0 : i32
    %c0_i32_1 = arith.constant 0 : i32
    return %arg0, %c0_i32, %c0_i32_0 : i32, i32, i32
  }
  func.func @transform_2(%arg0: i32) -> (i32, i32) {
    %c0_i32 = arith.constant 0 : i32
    %c0_i32_0 = arith.constant 0 : i32
    %c0_i32_1 = arith.constant 0 : i32
    return %c0_i32, %c0_i32_0 : i32, i32
  }
  func.func @transform_3(%arg0: i32) -> (i32, i32) {
    %c0_i32 = arith.constant 0 : i32
    %c0_i32_0 = arith.constant 0 : i32
    %c0_i32_1 = arith.constant 0 : i32
    return %c0_i32, %c0_i32_0 : i32, i32
  }
  func.func @transform_4(%arg0: i32) -> (i32, i32) {
    %c0_i32 = arith.constant 0 : i32
    %c0_i32_0 = arith.constant 0 : i32
    %c0_i32_1 = arith.constant 0 : i32
    return %c0_i32, %c0_i32_0 : i32, i32
  }
  func.func @transform_5(%arg0: i32) -> i32 {
    %c0_i32 = arith.constant 0 : i32
    %c0_i32_0 = arith.constant 0 : i32
    return %c0_i32 : i32
  }
  func.func @transform_6(%arg0: i32) -> (i32, i32) {
    %c0_i32 = arith.constant 0 : i32
    %c0_i32_0 = arith.constant 0 : i32
    return %arg0, %c0_i32 : i32, i32
  }
}

</mosaic_0001>

<llo_original>
// kernel: tpu_custom_call.1
$region0: #{tpu_custom_call.1}
  #allocation0 [shape = 'u32[]', space=smem, size = 0x4, offset = 0x4, fixed_abs, tag = 'smem constant byte address 0x4 - core index']
  #allocation1 [shape = 'u32[144,128]{1,0:T(1,128)}', space=vmem, size = 0x12000, scoped, tag = 'internal scratch']
  %s0 = inlined_call_operand.hbm [shape: bf16[64,128], index: 0, kind: input, shape index: {}]
  %s1 = inlined_call_operand.hbm [shape: bf16[64,16,128], index: 1, kind: input, shape index: {}]
  %s2 = inlined_call_operand.hbm [shape: bf16[128,256], index: 2, kind: input, shape index: {}]
  %s3 = inlined_call_operand.vmem [shape: f32[4,128], index: 3, kind: input, shape index: {}]
  %s4 = inlined_call_operand.vmem [shape: f32[1,128], index: 4, kind: input, shape index: {}]
  %s5 = inlined_call_operand.vmem [shape: f32[3], index: 5, kind: input, shape index: {}]
  %s6 = inlined_call_operand.hbm [shape: f32[64,128], index: 6, kind: output, shape index: {}]
  %s7 = sld [smem:[#allocation0]]
  $region73: #{tpu_custom_call.1} parent=0
    _
  %s9 = ssub.s32 1, %s7
  %s10 = scalar_select 0, %s9, %s7
  $region1: #{tpu_custom_call.1} parent=0
    #allocation2 [shape = 'u8[16384]{0}', space=vmem, size = 0x4000, scoped, tag = 'input window, operand 0']
    #allocation3 [shape = 's32[2]{0}', space=sflag, size = 0x8, scoped, tag = 'scoped memory for tpu_custom_call.1']
    #allocation4 [shape = 's32[2]{0}', space=sflag, size = 0x8, scoped, tag = 'scoped memory for tpu_custom_call.1']
    #allocation5 [shape = 's32[2]{0}', space=sflag, size = 0x8, scoped, tag = 'scoped memory for tpu_custom_call.1']
    #allocation6 [shape = 'u8[262144]{0}', space=vmem, size = 0x40000, scoped, tag = 'input window, operand 1']
    #allocation7 [shape = 's32[2]{0}', space=sflag, size = 0x8, scoped, tag = 'scoped memory for tpu_custom_call.1']
    #allocation8 [shape = 'u8[65536]{0}', space=vmem, size = 0x10000, scoped, tag = 'input window, operand 2, single buffered']
    #allocation9 [shape = 'u8[512]{0}', space=smem, size = 0x200, scoped, tag = 'input window, operand 5, single buffered']
    #allocation10 [shape = 'u8[32768]{0}', space=vmem, size = 0x8000, scoped, tag = 'output window, operand 0']
    %11 = vsyncpa [#allocation3], 0
    %s12 = scalar_lea.sflag [#allocation3], 1
    %13 = vsyncpa %s12, 0
    %14 = vsyncpa [#allocation7], 0
    %s15 = scalar_lea.sflag [#allocation7], 1
    %16 = vsyncpa %s15, 0
    %17 = vsyncpa [#allocation5], 0
    %18 = vsyncpa [#allocation4], 0
    %s19 = scalar_lea.sflag [#allocation4], 1
    %20 = vsyncpa %s19, 0
    loop: start=0, step=1, limit=4
    $region2: #{tpu_custom_call.1} parent=1 // loop_pre_header
      _
    $region3: #{tpu_custom_call.1} parent=1 // loop_header
      %s22 = sphi 0, %s26
      %p23 = scmp.ge.s32.totalorder %s22, 4
      %s32 = sphi 0, %s34
      %s35 = sphi 0, %s32
      %s36 = sphi 0, %s35
      %s52 = sphi 0, %s36
      %s58 = sphi 0, %s60
      %s61 = sphi 0, %s58
      %s62 = sphi 0, %s61
      %s78 = sphi 0, %s62
      %s82 = sphi 0, %s82
      %s84 = sphi 0, %s82
      %s85 = sphi 0, %s84
      %s99 = sphi 0, %s85
      %s103 = sphi 0, %s103
      %s105 = sphi 0, %s103
      %s106 = sphi 0, %s105
      %s120 = sphi 0, %s106
      %s124 = sphi 0, %s124
      %s126 = sphi 0, %s124
      %s127 = sphi 0, %s126
      %s141 = sphi 0, %s127
      %s145 = sphi 0, %s145
      %s147 = sphi 0, %s145
      %s148 = sphi 0, %s147
      %s162 = sphi 0, %s148
      %s168 = sphi 0, %s170
      %s171 = sphi 0, %s168
      %s172 = sphi 0, %s171
      %s188 = sphi 0, %s172
    $region4: #{tpu_custom_call.1} parent=1 // loop_header_branch
      %25 = sbr.rel (%p23) target = $region8
    $region5: #{tpu_custom_call.1} parent=1 // loop_body
      %s27 = ssub.s32 %s22, 1
      %s28 = ssub.s32 %s22, 2
      %s29 = sadd.s32 %s22, 1
      %s30 = ssub.s32 %s22, %s29
      %p31 = scmp.eq.s32.totalorder %s30, 0
      %s33 = sadd.s32 %s32, 1
      %s34 = scalar_select %p31, %s32, %s33
      %p37 = pneg %p31
      %p38 = scmp.eq.s32.totalorder %s22, 1
      %p39 = por %p37, %p38
      %p40 = scmp.ne.s32.totalorder %s32, %s35
      %p41 = scmp.eq.s32.totalorder %s22, 0
      %p42 = por %p40, %p41
      %p43 = scmp.ne.s32.totalorder %s32, %s35
      %p44 = scmp.eq.s32.totalorder %s27, 1
      %p45 = por %p43, %p44
      %p46 = scmp.ne.s32.totalorder %s35, %s36
      %p47 = scmp.eq.s32.totalorder %s27, 0
      %p48 = por %p46, %p47
      %p49 = scmp.ne.s32.totalorder %s35, %s36
      %p50 = scmp.eq.s32.totalorder %s28, 1
      %p51 = por %p49, %p50
      %p53 = scmp.ne.s32.totalorder %s36, %s52
      %p54 = scmp.eq.s32.totalorder %s28, 0
      %p55 = por %p53, %p54
      %s56 = ssub.s32 %s22, %s29
      %p57 = scmp.eq.s32.totalorder %s56, 0
      %s59 = sadd.s32 %s58, 1
      %s60 = scalar_select %p57, %s58, %s59
      %p63 = pneg %p57
      %p64 = scmp.eq.s32.totalorder %s22, 1
      %p65 = por %p63, %p64
      %p66 = scmp.ne.s32.totalorder %s58, %s61
      %p67 = scmp.eq.s32.totalorder %s22, 0
      %p68 = por %p66, %p67
      %p69 = scmp.ne.s32.totalorder %s58, %s61
      %p70 = scmp.eq.s32.totalorder %s27, 1
      %p71 = por %p69, %p70
      %p72 = scmp.ne.s32.totalorder %s61, %s62
      %p73 = scmp.eq.s32.totalorder %s27, 0
      %p74 = por %p72, %p73
      %p75 = scmp.ne.s32.totalorder %s61, %s62
      %p76 = scmp.eq.s32.totalorder %s28, 1
      %p77 = por %p75, %p76
      %p79 = scmp.ne.s32.totalorder %s62, %s78
      %p80 = scmp.eq.s32.totalorder %s28, 0
      %p81 = por %p79, %p80
      %s83 = sadd.s32 %s82, 1
      %p86 = scmp.eq.s32.totalorder %s22, 1
      %p87 = scmp.ne.s32.totalorder %s82, %s84
      %p88 = scmp.eq.s32.totalorder %s22, 0
      %p89 = por %p87, %p88
      %p90 = scmp.ne.s32.totalorder %s82, %s84
      %p91 = scmp.eq.s32.totalorder %s27, 1
      %p92 = por %p90, %p91
      %p93 = scmp.ne.s32.totalorder %s84, %s85
      %p94 = scmp.eq.s32.totalorder %s27, 0
      %p95 = por %p93, %p94
      %p96 = scmp.ne.s32.totalorder %s84, %s85
      %p97 = scmp.eq.s32.totalorder %s28, 1
      %p98 = por %p96, %p97
      %p100 = scmp.ne.s32.totalorder %s85, %s99
      %p101 = scmp.eq.s32.totalorder %s28, 0
      %p102 = por %p100, %p101
      %s104 = sadd.s32 %s103, 1
      %p107 = scmp.eq.s32.totalorder %s22, 1
      %p108 = scmp.ne.s32.totalorder %s103, %s105
      %p109 = scmp.eq.s32.totalorder %s22, 0
      %p110 = por %p108, %p109
      %p111 = scmp.ne.s32.totalorder %s103, %s105
      %p112 = scmp.eq.s32.totalorder %s27, 1
      %p113 = por %p111, %p112
      %p114 = scmp.ne.s32.totalorder %s105, %s106
      %p115 = scmp.eq.s32.totalorder %s27, 0
      %p116 = por %p114, %p115
      %p117 = scmp.ne.s32.totalorder %s105, %s106
      %p118 = scmp.eq.s32.totalorder %s28, 1
      %p119 = por %p117, %p118
      %p121 = scmp.ne.s32.totalorder %s106, %s120
      %p122 = scmp.eq.s32.totalorder %s28, 0
      %p123 = por %p121, %p122
      %s125 = sadd.s32 %s124, 1
      %p128 = scmp.eq.s32.totalorder %s22, 1
      %p129 = scmp.ne.s32.totalorder %s124, %s126
      %p130 = scmp.eq.s32.totalorder %s22, 0
      %p131 = por %p129, %p130
      %p132 = scmp.ne.s32.totalorder %s124, %s126
      %p133 = scmp.eq.s32.totalorder %s27, 1
      %p134 = por %p132, %p133
      %p135 = scmp.ne.s32.totalorder %s126, %s127
      %p136 = scmp.eq.s32.totalorder %s27, 0
      %p137 = por %p135, %p136
      %p138 = scmp.ne.s32.totalorder %s126, %s127
      %p139 = scmp.eq.s32.totalorder %s28, 1
      %p140 = por %p138, %p139
      %p142 = scmp.ne.s32.totalorder %s127, %s141
      %p143 = scmp.eq.s32.totalorder %s28, 0
      %p144 = por %p142, %p143
      %s146 = sadd.s32 %s145, 1
      %p149 = scmp.eq.s32.totalorder %s22, 1
      %p150 = scmp.ne.s32.totalorder %s145, %s147
      %p151 = scmp.eq.s32.totalorder %s22, 0
      %p152 = por %p150, %p151
      %p153 = scmp.ne.s32.totalorder %s145, %s147
      %p154 = scmp.eq.s32.totalorder %s27, 1
      %p155 = por %p153, %p154
      %p156 = scmp.ne.s32.totalorder %s147, %s148
      %p157 = scmp.eq.s32.totalorder %s27, 0
      %p158 = por %p156, %p157
      %p159 = scmp.ne.s32.totalorder %s147, %s148
      %p160 = scmp.eq.s32.totalorder %s28, 1
      %p161 = por %p159, %p160
      %p163 = scmp.ne.s32.totalorder %s148, %s162
      %p164 = scmp.eq.s32.totalorder %s28, 0
      %p165 = por %p163, %p164
      %s166 = ssub.s32 %s22, %s29
      %p167 = scmp.eq.s32.totalorder %s166, 0
      %s169 = sadd.s32 %s168, 1
      %s170 = scalar_select %p167, %s168, %s169
      %p173 = pneg %p167
      %p174 = scmp.eq.s32.totalorder %s22, 1
      %p175 = por %p173, %p174
      %p176 = scmp.ne.s32.totalorder %s168, %s171
      %p177 = scmp.eq.s32.totalorder %s22, 0
      %p178 = por %p176, %p177
      %p179 = scmp.ne.s32.totalorder %s168, %s171
      %p180 = scmp.eq.s32.totalorder %s27, 1
      %p181 = por %p179, %p180
      %p182 = scmp.ne.s32.totalorder %s171, %s172
      %p183 = scmp.eq.s32.totalorder %s27, 0
      %p184 = por %p182, %p183
      %p185 = scmp.ne.s32.totalorder %s171, %s172
      %p186 = scmp.eq.s32.totalorder %s28, 1
      %p187 = por %p185, %p186
      %p189 = scmp.ne.s32.totalorder %s172, %s188
      %p190 = scmp.eq.s32.totalorder %s28, 0
      %p191 = por %p189, %p190
      %p192 = scmp.le.s32.totalorder 1, %s22
      %p193 = scmp.lt.s32.totalorder %s22, 3
      %p194 = pnand %p192, %p193
      %p195 = pneg %p194
      // Predicated region
      $region9: #{tpu_custom_call.1} parent=5 // pred_check
        _
      $region10: #{tpu_custom_call.1} parent=5 // pred_check_branch
        %197 = sbr.rel (%p194) target = $region12
      $region11: #{tpu_custom_call.1} parent=5 // pred_region
        %s198 = ssub.s32 %s22, 1
        // Predicated region
        $region13: #{tpu_custom_call.1} parent=11 // pred_check
          %p199 = pneg %p95
        $region14: #{tpu_custom_call.1} parent=11 // pred_check_branch
          %201 = sbr.rel (%p199) target = $region16
        $region15: #{tpu_custom_call.1} parent=11 // pred_region
          %s203 = ssub.s32 2048, 2048
          %204 = vsyncadd [#allocation7], %s203
          %s205 = sshll.u32 [#allocation8], 4
          %s206 = int_to_ptr.vmem [resolvable:$true] %s205
          %211 = dma.hbm_to_vmem [thread:$0]  %s2, 2048, %s206, [#allocation7], 128, 128, 8
        $region16: #{tpu_custom_call.1} parent=11 // pred_fallthru
          _
        // Predicated region
        $region17: #{tpu_custom_call.1} parent=11 // pred_check
          %p212 = pneg %p116
        $region18: #{tpu_custom_call.1} parent=11 // pred_check_branch
          %214 = sbr.rel (%p212) target = $region20
        $region19: #{tpu_custom_call.1} parent=11 // pred_region
          _
        $region20: #{tpu_custom_call.1} parent=11 // pred_fallthru
          _
        // Predicated region
        $region21: #{tpu_custom_call.1} parent=11 // pred_check
          %p215 = pneg %p137
        $region22: #{tpu_custom_call.1} parent=11 // pred_check_branch
          %217 = sbr.rel (%p215) target = $region24
        $region23: #{tpu_custom_call.1} parent=11 // pred_region
          _
        $region24: #{tpu_custom_call.1} parent=11 // pred_fallthru
          _
        // Predicated region
        $region25: #{tpu_custom_call.1} parent=11 // pred_check
          %p218 = pneg %p158
        $region26: #{tpu_custom_call.1} parent=11 // pred_check_branch
          %220 = sbr.rel (%p218) target = $region28
        $region27: #{tpu_custom_call.1} parent=11 // pred_region
          %s222 = ssub.s32 16, 16
          %223 = vsyncadd [#allocation5], %s222
          %s225 = sshll.u32 %s5, 4
          %s226 = int_to_ptr.vmem [resolvable:$true] %s225
          %228 = dma.vmem_to_smem %s226, 16, [#allocation9], [#allocation5]
        $region28: #{tpu_custom_call.1} parent=11 // pred_fallthru
          _
      $region12: #{tpu_custom_call.1} parent=5 // pred_fallthru
        _
      %p229 = scmp.lt.s32.totalorder %s22, 2
      // Predicated region
      $region29: #{tpu_custom_call.1} parent=5 // pred_check
        %p230 = pneg %p229
      $region30: #{tpu_custom_call.1} parent=5 // pred_check_branch
        %232 = sbr.rel (%p230) target = $region32
      $region31: #{tpu_custom_call.1} parent=5 // pred_region
        // Predicated region
        $region33: #{tpu_custom_call.1} parent=31 // pred_check
          %p233 = pneg %p42
        $region34: #{tpu_custom_call.1} parent=31 // pred_check_branch
          %235 = sbr.rel (%p233) target = $region36
        $region35: #{tpu_custom_call.1} parent=31 // pred_region
          %s236 = sand.u32 %s32, 1
          %s237 = scalar_lea.sflag [#allocation3], %s236
          %s238 = sand.u32 %s32, 1
          %s239 = smul.addr %s238, 16
          %s240 = scalar_lea.vmem [#allocation2], %s239
          %s241 = smul.u32 4, %s22
          %s243 = ssub.s32 256, 256
          %244 = vsyncadd %s237, %s243
          %s245 = smul.addr %s241, 64
          %s246 = scalar_lea.hbm %s0, %s245
          %s247 = sshll.u32 %s240, 4
          %s248 = int_to_ptr.vmem [resolvable:$true] %s247
          %253 = dma.hbm_to_vmem [thread:$0]  %s246, 256, %s248, %s237, 64, 64, 4
        $region36: #{tpu_custom_call.1} parent=31 // pred_fallthru
          _
        // Predicated region
        $region37: #{tpu_custom_call.1} parent=31 // pred_check
          %p254 = pneg %p68
        $region38: #{tpu_custom_call.1} parent=31 // pred_check_branch
          %256 = sbr.rel (%p254) target = $region40
        $region39: #{tpu_custom_call.1} parent=31 // pred_region
          %s257 = sand.u32 %s22, 1
          %s258 = scalar_lea.sflag [#allocation7], %s257
          %s259 = sand.u32 %s58, 1
          %s260 = smul.addr %s259, 256
          %s261 = scalar_lea.vmem [#allocation6], %s260
          %s262 = smul.u32 32, %s22
          %s264 = ssub.s32 4096, 4096
          %265 = vsyncadd %s258, %s264
          %s266 = smul.addr %s262, 2
          %s267 = smul.addr %s266, 64
          %s268 = scalar_lea.hbm %s1, %s267
          %s269 = sshll.u32 %s261, 4
          %s270 = int_to_ptr.vmem [resolvable:$true] %s269
          %275 = dma.hbm_to_vmem [thread:$0]  %s268, 4096, %s270, %s258, 64, 64, 4
        $region40: #{tpu_custom_call.1} parent=31 // pred_fallthru
          _
      $region32: #{tpu_custom_call.1} parent=5 // pred_fallthru
        _
      %p276 = scmp.le.s32.totalorder 1, %s22
      %p277 = scmp.lt.s32.totalorder %s22, 3
      %p278 = pnand %p276, %p277
      %p279 = pneg %p278
      // Predicated region
      $region41: #{tpu_custom_call.1} parent=5 // pred_check
        _
      $region42: #{tpu_custom_call.1} parent=5 // pred_check_branch
        %281 = sbr.rel (%p278) target = $region44
      $region43: #{tpu_custom_call.1} parent=5 // pred_region
        %s282 = ssub.s32 %s22, 1
        %s283 = sand.u32 %s35, 1
        %s284 = scalar_lea.sflag [#allocation3], %s283
        %s285 = sand.u32 %s35, 1
        %s286 = smul.addr %s285, 16
        %s287 = scalar_lea.vmem [#allocation2], %s286
        // Predicated region
        $region45: #{tpu_custom_call.1} parent=43 // pred_check
          %p288 = pneg %p48
        $region46: #{tpu_custom_call.1} parent=43 // pred_check_branch
          %290 = sbr.rel (%p288) target = $region48
        $region47: #{tpu_custom_call.1} parent=43 // pred_region
          %291 = dma.done %s284, 256
        $region48: #{tpu_custom_call.1} parent=43 // pred_fallthru
          _
        %s292 = sand.u32 %s27, 1
        %s293 = scalar_lea.sflag [#allocation7], %s292
        %s294 = sand.u32 %s61, 1
        %s295 = smul.addr %s294, 256
        %s296 = scalar_lea.vmem [#allocation6], %s295
        // Predicated region
        $region49: #{tpu_custom_call.1} parent=43 // pred_check
          %p297 = pneg %p74
        $region50: #{tpu_custom_call.1} parent=43 // pred_check_branch
          %299 = sbr.rel (%p297) target = $region52
        $region51: #{tpu_custom_call.1} parent=43 // pred_region
          %300 = dma.done %s293, 4096
        $region52: #{tpu_custom_call.1} parent=43 // pred_fallthru
          _
        // Predicated region
        $region53: #{tpu_custom_call.1} parent=43 // pred_check
          %p301 = pneg %p95
        $region54: #{tpu_custom_call.1} parent=43 // pred_check_branch
          %303 = sbr.rel (%p301) target = $region56
        $region55: #{tpu_custom_call.1} parent=43 // pred_region
          %304 = dma.done [#allocation7], 2048
        $region56: #{tpu_custom_call.1} parent=43 // pred_fallthru
          _
        // Predicated region
        $region57: #{tpu_custom_call.1} parent=43 // pred_check
          %p305 = pneg %p158
        $region58: #{tpu_custom_call.1} parent=43 // pred_check_branch
          %307 = sbr.rel (%p305) target = $region60
        $region59: #{tpu_custom_call.1} parent=43 // pred_region
          %308 = dma.done [#allocation5], 16
        $region60: #{tpu_custom_call.1} parent=43 // pred_fallthru
          _
        %309 = sfence
        %s310 = sand.u32 %s35, 1
        %s311 = scalar_lea.sflag [#allocation3], %s310
        %s312 = sand.u32 %s35, 1
        %s313 = smul.addr %s312, 16
        %s314 = scalar_lea.vmem [#allocation2], %s313
        %p315 = pneg %p48
        %p316 = pneg %p45
        %s317 = sand.u32 %s27, 1
        %s318 = scalar_lea.sflag [#allocation7], %s317
        %s319 = sand.u32 %s61, 1
        %s320 = smul.addr %s319, 256
        %s321 = scalar_lea.vmem [#allocation6], %s320
        %p322 = pneg %p74
        %p323 = pneg %p71
        %p324 = pneg %p95
        %p325 = pneg %p92
        %p326 = pneg %p116
        %p327 = pneg %p113
        %p328 = pneg %p137
        %p329 = pneg %p134
        %p330 = pneg %p158
        %p331 = pneg %p155
        %p332 = pneg %p184
        %p333 = pneg %p181
        %s334 = sand.u32 %s171, 1
        %s335 = scalar_lea.sflag [#allocation4], %s334
        %s336 = sand.u32 %s171, 1
        %s337 = smul.addr %s336, 32
        %s338 = scalar_lea.vmem [#allocation10], %s337
        %s339 = smul.u32 4, %s27
        %s340 = smul.u32 32, %s27
        %s341 = smul.u32 4, %s27
        %v343 = vld [vmem:[%s287] sm:$0xf]
        %v344 = vld [vmem:[%s287 + $0x4] sm:$0xf]
        %v345 = vld [vmem:[%s287 + $0x8] sm:$0xf]
        %v346 = vld [vmem:[%s287 + $0xc] sm:$0xf]
        %v347 = vld [vmem:[%s296] sm:$0xf]
        %v348 = vld [vmem:[%s296 + $0x4] sm:$0xf]
        %v349 = vld [vmem:[%s296 + $0x8] sm:$0xf]
        %v350 = vld [vmem:[%s296 + $0xc] sm:$0xf]
        %v351 = vld [vmem:[%s296 + $0x10] sm:$0xf]
        %v352 = vld [vmem:[%s296 + $0x14] sm:$0xf]
        %v353 = vld [vmem:[%s296 + $0x18] sm:$0xf]
        %v354 = vld [vmem:[%s296 + $0x1c] sm:$0xf]
        %v355 = vld [vmem:[%s296 + $0x20] sm:$0xf]
        %v356 = vld [vmem:[%s296 + $0x24] sm:$0xf]
        %v357 = vld [vmem:[%s296 + $0x28] sm:$0xf]
        %v358 = vld [vmem:[%s296 + $0x2c] sm:$0xf]
        %v359 = vld [vmem:[%s296 + $0x30] sm:$0xf]
        %v360 = vld [vmem:[%s296 + $0x34] sm:$0xf]
        %v361 = vld [vmem:[%s296 + $0x38] sm:$0xf]
        %v362 = vld [vmem:[%s296 + $0x3c] sm:$0xf]
        %v363 = vld [vmem:[%s296 + $0x40] sm:$0xf]
        %v364 = vld [vmem:[%s296 + $0x44] sm:$0xf]
        %v365 = vld [vmem:[%s296 + $0x48] sm:$0xf]
        %v366 = vld [vmem:[%s296 + $0x4c] sm:$0xf]
        %v367 = vld [vmem:[%s296 + $0x50] sm:$0xf]
        %v368 = vld [vmem:[%s296 + $0x54] sm:$0xf]
        %v369 = vld [vmem:[%s296 + $0x58] sm:$0xf]
        %v370 = vld [vmem:[%s296 + $0x5c] sm:$0xf]
        %v371 = vld [vmem:[%s296 + $0x60] sm:$0xf]
        %v372 = vld [vmem:[%s296 + $0x64] sm:$0xf]
        %v373 = vld [vmem:[%s296 + $0x68] sm:$0xf]
        %v374 = vld [vmem:[%s296 + $0x6c] sm:$0xf]
        %v375 = vld [vmem:[%s296 + $0x70] sm:$0xf]
        %v376 = vld [vmem:[%s296 + $0x74] sm:$0xf]
        %v377 = vld [vmem:[%s296 + $0x78] sm:$0xf]
        %v378 = vld [vmem:[%s296 + $0x7c] sm:$0xf]
        %v379 = vld [vmem:[%s296 + $0x80] sm:$0xf]
        %v380 = vld [vmem:[%s296 + $0x84] sm:$0xf]
        %v381 = vld [vmem:[%s296 + $0x88] sm:$0xf]
        %v382 = vld [vmem:[%s296 + $0x8c] sm:$0xf]
        %v383 = vld [vmem:[%s296 + $0x90] sm:$0xf]
        %v384 = vld [vmem:[%s296 + $0x94] sm:$0xf]
        %v385 = vld [vmem:[%s296 + $0x98] sm:$0xf]
        %v386 = vld [vmem:[%s296 + $0x9c] sm:$0xf]
        %v387 = vld [vmem:[%s296 + $0xa0] sm:$0xf]
        %v388 = vld [vmem:[%s296 + $0xa4] sm:$0xf]
        %v389 = vld [vmem:[%s296 + $0xa8] sm:$0xf]
        %v390 = vld [vmem:[%s296 + $0xac] sm:$0xf]
        %v391 = vld [vmem:[%s296 + $0xb0] sm:$0xf]
        %v392 = vld [vmem:[%s296 + $0xb4] sm:$0xf]
        %v393 = vld [vmem:[%s296 + $0xb8] sm:$0xf]
        %v394 = vld [vmem:[%s296 + $0xbc] sm:$0xf]
        %v395 = vld [vmem:[%s296 + $0xc0] sm:$0xf]
        %v396 = vld [vmem:[%s296 + $0xc4] sm:$0xf]
        %v397 = vld [vmem:[%s296 + $0xc8] sm:$0xf]
        %v398 = vld [vmem:[%s296 + $0xcc] sm:$0xf]
        %v399 = vld [vmem:[%s296 + $0xd0] sm:$0xf]
        %v400 = vld [vmem:[%s296 + $0xd4] sm:$0xf]
        %v401 = vld [vmem:[%s296 + $0xd8] sm:$0xf]
        %v402 = vld [vmem:[%s296 + $0xdc] sm:$0xf]
        %v403 = vld [vmem:[%s296 + $0xe0] sm:$0xf]
        %v404 = vld [vmem:[%s296 + $0xe4] sm:$0xf]
        %v405 = vld [vmem:[%s296 + $0xe8] sm:$0xf]
        %v406 = vld [vmem:[%s296 + $0xec] sm:$0xf]
        %v407 = vld [vmem:[%s296 + $0xf0] sm:$0xf]
        %v408 = vld [vmem:[%s296 + $0xf4] sm:$0xf]
        %v409 = vld [vmem:[%s296 + $0xf8] sm:$0xf]
        %v410 = vld [vmem:[%s296 + $0xfc] sm:$0xf]
        %v411 = vld [vmem:[#allocation8] sm:$0xff]
        %v412 = vld [vmem:[#allocation8 + $0x8] sm:$0xff]
        %v413 = vld [vmem:[#allocation8 + $0x10] sm:$0xff]
        %v414 = vld [vmem:[#allocation8 + $0x18] sm:$0xff]
        %v415 = vld [vmem:[#allocation8 + $0x20] sm:$0xff]
        %v416 = vld [vmem:[#allocation8 + $0x28] sm:$0xff]
        %v417 = vld [vmem:[#allocation8 + $0x30] sm:$0xff]
        %v418 = vld [vmem:[#allocation8 + $0x38] sm:$0xff]
        %v419 = vld [vmem:[#allocation8 + $0x40] sm:$0xff]
        %v420 = vld [vmem:[#allocation8 + $0x48] sm:$0xff]
        %v421 = vld [vmem:[#allocation8 + $0x50] sm:$0xff]
        %v422 = vld [vmem:[#allocation8 + $0x58] sm:$0xff]
        %v423 = vld [vmem:[#allocation8 + $0x60] sm:$0xff]
        %v424 = vld [vmem:[#allocation8 + $0x68] sm:$0xff]
        %v425 = vld [vmem:[#allocation8 + $0x70] sm:$0xff]
        %v426 = vld [vmem:[#allocation8 + $0x78] sm:$0xff]
        %v431 = vunpack.c.l.b16 %v343
        %v432 = vunpack.c.l.b16 %v344
        %v433 = vunpack.c.l.b16 %v345
        %v434 = vunpack.c.l.b16 %v346
        %v435 = vpack.c.b16 %v432, %v431
        %v436 = vpack.c.b16 %v434, %v433
        %v455 = vunpack.c.l.b16 %v411
        %v456 = vunpack.c.h.b16 %v411
        %v457 = vunpack.c.l.b16 %v412
        %v458 = vunpack.c.h.b16 %v412
        %v459 = vunpack.c.l.b16 %v413
        %v460 = vunpack.c.h.b16 %v413
        %v461 = vunpack.c.l.b16 %v414
        %v462 = vunpack.c.h.b16 %v414
        %v463 = vunpack.c.l.b16 %v415
        %v464 = vunpack.c.h.b16 %v415
        %v465 = vunpack.c.l.b16 %v416
        %v466 = vunpack.c.h.b16 %v416
        %v467 = vunpack.c.l.b16 %v417
        %v468 = vunpack.c.h.b16 %v417
        %v469 = vunpack.c.l.b16 %v418
        %v470 = vunpack.c.h.b16 %v418
        %v471 = vunpack.c.l.b16 %v419
        %v472 = vunpack.c.h.b16 %v419
        %v473 = vunpack.c.l.b16 %v420
        %v474 = vunpack.c.h.b16 %v420
        %v475 = vunpack.c.l.b16 %v421
        %v476 = vunpack.c.h.b16 %v421
        %v477 = vunpack.c.l.b16 %v422
        %v478 = vunpack.c.h.b16 %v422
        %v479 = vunpack.c.l.b16 %v423
        %v480 = vunpack.c.h.b16 %v423
        %v481 = vunpack.c.l.b16 %v424
        %v482 = vunpack.c.h.b16 %v424
        %v483 = vunpack.c.l.b16 %v425
        %v484 = vunpack.c.h.b16 %v425
        %v485 = vunpack.c.l.b16 %v426
        %v486 = vunpack.c.h.b16 %v426
        %v487 = vpack.c.b16 %v457, %v455
        %v488 = vpack.c.b16 %v458, %v456
        %v489 = vpack.c.b16 %v461, %v459
        %v490 = vpack.c.b16 %v462, %v460
        %v491 = vpack.c.b16 %v465, %v463
        %v492 = vpack.c.b16 %v466, %v464
        %v493 = vpack.c.b16 %v469, %v467
        %v494 = vpack.c.b16 %v470, %v468
        %v495 = vpack.c.b16 %v473, %v471
        %v496 = vpack.c.b16 %v474, %v472
        %v497 = vpack.c.b16 %v477, %v475
        %v498 = vpack.c.b16 %v478, %v476
        %v499 = vpack.c.b16 %v481, %v479
        %v500 = vpack.c.b16 %v482, %v480
        %v501 = vpack.c.b16 %v485, %v483
        %v502 = vpack.c.b16 %v486, %v484
        %519 = vmatprep.subr.bf16.mxu0 %v488
        %520 = vmatpush1.bf16.msra.mxu0 %v487
        %521 = vmatprep.subr.bf16.mxu0 %v490
        %522 = vmatpush1.bf16.msra.mxu0 %v489
        %523 = vmatprep.subr.bf16.mxu0 %v492
        %524 = vmatpush1.bf16.msra.mxu0 %v491
        %525 = vmatprep.subr.bf16.mxu0 %v494
        %526 = vmatpush1.bf16.msra.mxu0 %v493
        %527 = vmatprep.subr.bf16.mxu0 %v496
        %528 = vmatpush1.bf16.msra.mxu0 %v495
        %529 = vmatprep.subr.bf16.mxu0 %v498
        %530 = vmatpush1.bf16.msra.mxu0 %v497
        %531 = vmatprep.subr.bf16.mxu0 %v500
        %532 = vmatpush1.bf16.msra.mxu0 %v499
        %533 = vmatprep.subr.bf16.mxu0 %v502
        %534 = vmatpush1.bf16.msra.mxu0 %v501
        %535 = vmatprep.subr.bf16.mxu0 0
        %536 = vmatpush1.bf16.msra.mxu0 0
        %537 = vmatprep.subr.bf16.mxu0 0
        %538 = vmatpush1.bf16.msra.mxu0 0
        %539 = vmatprep.subr.bf16.mxu0 0
        %540 = vmatpush1.bf16.msra.mxu0 0
        %541 = vmatprep.subr.bf16.mxu0 0
        %542 = vmatpush1.bf16.msra.mxu0 0
        %543 = vmatprep.subr.bf16.mxu0 0
        %544 = vmatpush1.bf16.msra.mxu0 0
        %545 = vmatprep.subr.bf16.mxu0 0
        %546 = vmatpush1.bf16.msra.mxu0 0
        %547 = vmatprep.subr.bf16.mxu0 0
        %548 = vmatpush1.bf16.msra.mxu0 0
        %549 = vmatprep.subr.bf16.mxu0 0
        %550 = vmatpush1.bf16.msra.mxu0 0
        %551 = vmatprep.mubr.bf16.mxu0 0
        %552 = vmatmul.mubr.bf16.gmra.mrb[0].mxu0 %v435
        %v553 = vpop.f32.mrb[0].mxu0
        %v554 = vadd.f32 0.0, %v553
        %v555 = vpop.f32.mrb[0].mxu0
        %v556 = vadd.f32 0.0, %v555
        %v557 = vpop.f32.mrb[0].mxu0
        %v558 = vadd.f32 0.0, %v557
        %v559 = vpop.f32.mrb[0].mxu0
        %v560 = vadd.f32 0.0, %v559
        %561 = vmatprep.mubr.bf16.mxu0 0
        %562 = vmatmul.mubr.bf16.gmra.mrb[0].mxu0 %v436
        %v563 = vpop.f32.mrb[0].mxu0
        %v564 = vadd.f32 0.0, %v563
        %v565 = vpop.f32.mrb[0].mxu0
        %v566 = vadd.f32 0.0, %v565
        %v567 = vpop.f32.mrb[0].mxu0
        %v568 = vadd.f32 0.0, %v567
        %v569 = vpop.f32.mrb[0].mxu0
        %v570 = vadd.f32 0.0, %v569
        %571 = vdwg.mxu0
        %v636 = vunpack.c.l.b16 %v347
        %v637 = vunpack.c.l.b16 %v348
        %v638 = vunpack.c.l.b16 %v349
        %v639 = vunpack.c.l.b16 %v350
        %v640 = vunpack.c.l.b16 %v351
        %v641 = vunpack.c.l.b16 %v352
        %v642 = vunpack.c.l.b16 %v353
        %v643 = vunpack.c.l.b16 %v354
        %v644 = vunpack.c.l.b16 %v355
        %v645 = vunpack.c.l.b16 %v356
        %v646 = vunpack.c.l.b16 %v357
        %v647 = vunpack.c.l.b16 %v358
        %v648 = vunpack.c.l.b16 %v359
        %v649 = vunpack.c.l.b16 %v360
        %v650 = vunpack.c.l.b16 %v361
        %v651 = vunpack.c.l.b16 %v362
        %v652 = vunpack.c.l.b16 %v363
        %v653 = vunpack.c.l.b16 %v364
        %v654 = vunpack.c.l.b16 %v365
        %v655 = vunpack.c.l.b16 %v366
        %v656 = vunpack.c.l.b16 %v367
        %v657 = vunpack.c.l.b16 %v368
        %v658 = vunpack.c.l.b16 %v369
        %v659 = vunpack.c.l.b16 %v370
        %v660 = vunpack.c.l.b16 %v371
        %v661 = vunpack.c.l.b16 %v372
        %v662 = vunpack.c.l.b16 %v373
        %v663 = vunpack.c.l.b16 %v374
        %v664 = vunpack.c.l.b16 %v375
        %v665 = vunpack.c.l.b16 %v376
        %v666 = vunpack.c.l.b16 %v377
        %v667 = vunpack.c.l.b16 %v378
        %v668 = vunpack.c.l.b16 %v379
        %v669 = vunpack.c.l.b16 %v380
        %v670 = vunpack.c.l.b16 %v381
        %v671 = vunpack.c.l.b16 %v382
        %v672 = vunpack.c.l.b16 %v383
        %v673 = vunpack.c.l.b16 %v384
        %v674 = vunpack.c.l.b16 %v385
        %v675 = vunpack.c.l.b16 %v386
        %v676 = vunpack.c.l.b16 %v387
        %v677 = vunpack.c.l.b16 %v388
        %v678 = vunpack.c.l.b16 %v389
        %v679 = vunpack.c.l.b16 %v390
        %v680 = vunpack.c.l.b16 %v391
        %v681 = vunpack.c.l.b16 %v392
        %v682 = vunpack.c.l.b16 %v393
        %v683 = vunpack.c.l.b16 %v394
        %v684 = vunpack.c.l.b16 %v395
        %v685 = vunpack.c.l.b16 %v396
        %v686 = vunpack.c.l.b16 %v397
        %v687 = vunpack.c.l.b16 %v398
        %v688 = vunpack.c.l.b16 %v399
        %v689 = vunpack.c.l.b16 %v400
        %v690 = vunpack.c.l.b16 %v401
        %v691 = vunpack.c.l.b16 %v402
        %v692 = vunpack.c.l.b16 %v403
        %v693 = vunpack.c.l.b16 %v404
        %v694 = vunpack.c.l.b16 %v405
        %v695 = vunpack.c.l.b16 %v406
        %v696 = vunpack.c.l.b16 %v407
        %v697 = vunpack.c.l.b16 %v408
        %v698 = vunpack.c.l.b16 %v409
        %v699 = vunpack.c.l.b16 %v410
        %v700 = vpack.c.b16 %v637, %v636
        %v701 = vpack.c.b16 %v639, %v638
        %v702 = vpack.c.b16 %v641, %v640
        %v703 = vpack.c.b16 %v643, %v642
        %v704 = vpack.c.b16 %v645, %v644
        %v705 = vpack.c.b16 %v647, %v646
        %v706 = vpack.c.b16 %v649, %v648
        %v707 = vpack.c.b16 %v651, %v650
        %v708 = vpack.c.b16 %v653, %v652
        %v709 = vpack.c.b16 %v655, %v654
        %v710 = vpack.c.b16 %v657, %v656
        %v711 = vpack.c.b16 %v659, %v658
        %v712 = vpack.c.b16 %v661, %v660
        %v713 = vpack.c.b16 %v663, %v662
        %v714 = vpack.c.b16 %v665, %v664
        %v715 = vpack.c.b16 %v667, %v666
        %v716 = vpack.c.b16 %v669, %v668
        %v717 = vpack.c.b16 %v671, %v670
        %v718 = vpack.c.b16 %v673, %v672
        %v719 = vpack.c.b16 %v675, %v674
        %v720 = vpack.c.b16 %v677, %v676
        %v721 = vpack.c.b16 %v679, %v678
        %v722 = vpack.c.b16 %v681, %v680
        %v723 = vpack.c.b16 %v683, %v682
        %v724 = vpack.c.b16 %v685, %v684
        %v725 = vpack.c.b16 %v687, %v686
        %v726 = vpack.c.b16 %v689, %v688
        %v727 = vpack.c.b16 %v691, %v690
        %v728 = vpack.c.b16 %v693, %v692
        %v729 = vpack.c.b16 %v695, %v694
        %v730 = vpack.c.b16 %v697, %v696
        %v731 = vpack.c.b16 %v699, %v698
        %764 = vmatprep.subr.bf16.mxu0 %v488
        %765 = vmatpush1.bf16.msra.mxu0 %v487
        %766 = vmatprep.subr.bf16.mxu0 %v490
        %767 = vmatpush1.bf16.msra.mxu0 %v489
        %768 = vmatprep.subr.bf16.mxu0 %v492
        %769 = vmatpush1.bf16.msra.mxu0 %v491
        %770 = vmatprep.subr.bf16.mxu0 %v494
        %771 = vmatpush1.bf16.msra.mxu0 %v493
        %772 = vmatprep.subr.bf16.mxu0 %v496
        %773 = vmatpush1.bf16.msra.mxu0 %v495
        %774 = vmatprep.subr.bf16.mxu0 %v498
        %775 = vmatpush1.bf16.msra.mxu0 %v497
        %776 = vmatprep.subr.bf16.mxu0 %v500
        %777 = vmatpush1.bf16.msra.mxu0 %v499
        %778 = vmatprep.subr.bf16.mxu0 %v502
        %779 = vmatpush1.bf16.msra.mxu0 %v501
        %780 = vmatprep.subr.bf16.mxu0 0
        %781 = vmatpush1.bf16.msra.mxu0 0
        %782 = vmatprep.subr.bf16.mxu0 0
        %783 = vmatpush1.bf16.msra.mxu0 0
        %784 = vmatprep.subr.bf16.mxu0 0
        %785 = vmatpush1.bf16.msra.mxu0 0
        %786 = vmatprep.subr.bf16.mxu0 0
        %787 = vmatpush1.bf16.msra.mxu0 0
        %788 = vmatprep.subr.bf16.mxu0 0
        %789 = vmatpush1.bf16.msra.mxu0 0
        %790 = vmatprep.subr.bf16.mxu0 0
        %791 = vmatpush1.bf16.msra.mxu0 0
        %792 = vmatprep.subr.bf16.mxu0 0
        %793 = vmatpush1.bf16.msra.mxu0 0
        %794 = vmatprep.subr.bf16.mxu0 0
        %795 = vmatpush1.bf16.msra.mxu0 0
        %796 = vmatprep.mubr.bf16.mxu0 0
        %797 = vmatmul.mubr.bf16.gmra.mrb[0].mxu0 %v700
        %v798 = vpop.f32.mrb[0].mxu0
        %v799 = vadd.f32 0.0, %v798
        %v800 = vpop.f32.mrb[0].mxu0
        %v801 = vpop.f32.mrb[0].mxu0
        %v802 = vpop.f32.mrb[0].mxu0
        %v803 = vadd.f32 0.0, %v802
        %804 = vmatprep.mubr.bf16.mxu0 0
        %805 = vmatmul.mubr.bf16.gmra.mrb[0].mxu0 %v701
        %v806 = vpop.f32.mrb[0].mxu0
        %v807 = vadd.f32 0.0, %v806
        %v808 = vpop.f32.mrb[0].mxu0
        %v809 = vpop.f32.mrb[0].mxu0
        %v810 = vpop.f32.mrb[0].mxu0
        %v811 = vadd.f32 0.0, %v810
        %812 = vmatprep.mubr.bf16.mxu0 0
        %813 = vmatmul.mubr.bf16.gmra.mrb[0].mxu0 %v702
        %v814 = vpop.f32.mrb[0].mxu0
        %v815 = vadd.f32 0.0, %v814
        %v816 = vpop.f32.mrb[0].mxu0
        %v817 = vpop.f32.mrb[0].mxu0
        %v818 = vpop.f32.mrb[0].mxu0
        %v819 = vadd.f32 0.0, %v818
        %820 = vmatprep.mubr.bf16.mxu0 0
        %821 = vmatmul.mubr.bf16.gmra.mrb[0].mxu0 %v703
        %v822 = vpop.f32.mrb[0].mxu0
        %v823 = vadd.f32 0.0, %v822
        %v824 = vpop.f32.mrb[0].mxu0
        %v825 = vpop.f32.mrb[0].mxu0
        %v826 = vpop.f32.mrb[0].mxu0
        %v827 = vadd.f32 0.0, %v826
        %828 = vmatprep.mubr.bf16.mxu0 0
        %829 = vmatmul.mubr.bf16.gmra.mrb[0].mxu0 %v704
        %v830 = vpop.f32.mrb[0].mxu0
        %v831 = vadd.f32 0.0, %v830
        %v832 = vpop.f32.mrb[0].mxu0
        %v833 = vpop.f32.mrb[0].mxu0
        %v834 = vpop.f32.mrb[0].mxu0
        %v835 = vadd.f32 0.0, %v834
        %836 = vmatprep.mubr.bf16.mxu0 0
        %837 = vmatmul.mubr.bf16.gmra.mrb[0].mxu0 %v705
        %v838 = vpop.f32.mrb[0].mxu0
        %v839 = vadd.f32 0.0, %v838
        %v840 = vpop.f32.mrb[0].mxu0
        %v841 = vpop.f32.mrb[0].mxu0
        %v842 = vpop.f32.mrb[0].mxu0
        %v843 = vadd.f32 0.0, %v842
        %844 = vmatprep.mubr.bf16.mxu0 0
        %845 = vmatmul.mubr.bf16.gmra.mrb[0].mxu0 %v706
        %v846 = vpop.f32.mrb[0].mxu0
        %v847 = vadd.f32 0.0, %v846
        %v848 = vpop.f32.mrb[0].mxu0
        %v849 = vpop.f32.mrb[0].mxu0
        %v850 = vpop.f32.mrb[0].mxu0
        %v851 = vadd.f32 0.0, %v850
        %852 = vmatprep.mubr.bf16.mxu0 0
        %853 = vmatmul.mubr.bf16.gmra.mrb[0].mxu0 %v707
        %v854 = vpop.f32.mrb[0].mxu0
        %v855 = vadd.f32 0.0, %v854
        %v856 = vpop.f32.mrb[0].mxu0
        %v857 = vpop.f32.mrb[0].mxu0
        %v858 = vpop.f32.mrb[0].mxu0
        %v859 = vadd.f32 0.0, %v858
        %860 = vmatprep.mubr.bf16.mxu0 0
        %861 = vmatmul.mubr.bf16.gmra.mrb[0].mxu0 %v708
        %v862 = vpop.f32.mrb[0].mxu0
        %v863 = vadd.f32 0.0, %v862
        %v864 = vpop.f32.mrb[0].mxu0
        %v865 = vpop.f32.mrb[0].mxu0
        %v866 = vpop.f32.mrb[0].mxu0
        %v867 = vadd.f32 0.0, %v866
        %868 = vmatprep.mubr.bf16.mxu0 0
        %869 = vmatmul.mubr.bf16.gmra.mrb[0].mxu0 %v709
        %v870 = vpop.f32.mrb[0].mxu0
        %v871 = vadd.f32 0.0, %v870
        %v872 = vpop.f32.mrb[0].mxu0
        %v873 = vpop.f32.mrb[0].mxu0
        %v874 = vpop.f32.mrb[0].mxu0
        %v875 = vadd.f32 0.0, %v874
        %876 = vmatprep.mubr.bf16.mxu0 0
        %877 = vmatmul.mubr.bf16.gmra.mrb[0].mxu0 %v710
        %v878 = vpop.f32.mrb[0].mxu0
        %v879 = vadd.f32 0.0, %v878
        %v880 = vpop.f32.mrb[0].mxu0
        %v881 = vpop.f32.mrb[0].mxu0
        %v882 = vpop.f32.mrb[0].mxu0
        %v883 = vadd.f32 0.0, %v882
        %884 = vmatprep.mubr.bf16.mxu0 0
        %885 = vmatmul.mubr.bf16.gmra.mrb[0].mxu0 %v711
        %v886 = vpop.f32.mrb[0].mxu0
        %v887 = vadd.f32 0.0, %v886
        %v888 = vpop.f32.mrb[0].mxu0
        %v889 = vpop.f32.mrb[0].mxu0
        %v890 = vpop.f32.mrb[0].mxu0
        %v891 = vadd.f32 0.0, %v890
        %892 = vmatprep.mubr.bf16.mxu0 0
        %893 = vmatmul.mubr.bf16.gmra.mrb[0].mxu0 %v712
        %v894 = vpop.f32.mrb[0].mxu0
        %v895 = vadd.f32 0.0, %v894
        %v896 = vpop.f32.mrb[0].mxu0
        %v897 = vpop.f32.mrb[0].mxu0
        %v898 = vpop.f32.mrb[0].mxu0
        %v899 = vadd.f32 0.0, %v898
        %900 = vmatprep.mubr.bf16.mxu0 0
        %901 = vmatmul.mubr.bf16.gmra.mrb[0].mxu0 %v713
        %v902 = vpop.f32.mrb[0].mxu0
        %v903 = vadd.f32 0.0, %v902
        %v904 = vpop.f32.mrb[0].mxu0
        %v905 = vpop.f32.mrb[0].mxu0
        %v906 = vpop.f32.mrb[0].mxu0
        %v907 = vadd.f32 0.0, %v906
        %908 = vmatprep.mubr.bf16.mxu0 0
        %909 = vmatmul.mubr.bf16.gmra.mrb[0].mxu0 %v714
        %v910 = vpop.f32.mrb[0].mxu0
        %v911 = vadd.f32 0.0, %v910
        %v912 = vpop.f32.mrb[0].mxu0
        %v913 = vpop.f32.mrb[0].mxu0
        %v914 = vpop.f32.mrb[0].mxu0
        %v915 = vadd.f32 0.0, %v914
        %916 = vmatprep.mubr.bf16.mxu0 0
        %917 = vmatmul.mubr.bf16.gmra.mrb[0].mxu0 %v715
        %v918 = vpop.f32.mrb[0].mxu0
        %v919 = vadd.f32 0.0, %v918
        %v920 = vpop.f32.mrb[0].mxu0
        %v921 = vpop.f32.mrb[0].mxu0
        %v922 = vpop.f32.mrb[0].mxu0
        %v923 = vadd.f32 0.0, %v922
        %924 = vmatprep.mubr.bf16.mxu0 0
        %925 = vmatmul.mubr.bf16.gmra.mrb[0].mxu0 %v716
        %v926 = vpop.f32.mrb[0].mxu0
        %v927 = vadd.f32 0.0, %v926
        %v928 = vpop.f32.mrb[0].mxu0
        %v929 = vpop.f32.mrb[0].mxu0
        %v930 = vpop.f32.mrb[0].mxu0
        %v931 = vadd.f32 0.0, %v930
        %932 = vmatprep.mubr.bf16.mxu0 0
        %933 = vmatmul.mubr.bf16.gmra.mrb[0].mxu0 %v717
        %v934 = vpop.f32.mrb[0].mxu0
        %v935 = vadd.f32 0.0, %v934
        %v936 = vpop.f32.mrb[0].mxu0
        %v937 = vpop.f32.mrb[0].mxu0
        %v938 = vpop.f32.mrb[0].mxu0
        %v939 = vadd.f32 0.0, %v938
        %940 = vmatprep.mubr.bf16.mxu0 0
        %941 = vmatmul.mubr.bf16.gmra.mrb[0].mxu0 %v718
        %v942 = vpop.f32.mrb[0].mxu0
        %v943 = vadd.f32 0.0, %v942
        %v944 = vpop.f32.mrb[0].mxu0
        %v945 = vpop.f32.mrb[0].mxu0
        %v946 = vpop.f32.mrb[0].mxu0
        %v947 = vadd.f32 0.0, %v946
        %948 = vmatprep.mubr.bf16.mxu0 0
        %949 = vmatmul.mubr.bf16.gmra.mrb[0].mxu0 %v719
        %v950 = vpop.f32.mrb[0].mxu0
        %v951 = vadd.f32 0.0, %v950
        %v952 = vpop.f32.mrb[0].mxu0
        %v953 = vpop.f32.mrb[0].mxu0
        %v954 = vpop.f32.mrb[0].mxu0
        %v955 = vadd.f32 0.0, %v954
        %956 = vmatprep.mubr.bf16.mxu0 0
        %957 = vmatmul.mubr.bf16.gmra.mrb[0].mxu0 %v720
        %v958 = vpop.f32.mrb[0].mxu0
        %v959 = vadd.f32 0.0, %v958
        %v960 = vpop.f32.mrb[0].mxu0
        %v961 = vpop.f32.mrb[0].mxu0
        %v962 = vpop.f32.mrb[0].mxu0
        %v963 = vadd.f32 0.0, %v962
        %964 = vmatprep.mubr.bf16.mxu0 0
        %965 = vmatmul.mubr.bf16.gmra.mrb[0].mxu0 %v721
        %v966 = vpop.f32.mrb[0].mxu0
        %v967 = vadd.f32 0.0, %v966
        %v968 = vpop.f32.mrb[0].mxu0
        %v969 = vpop.f32.mrb[0].mxu0
        %v970 = vpop.f32.mrb[0].mxu0
        %v971 = vadd.f32 0.0, %v970
        %972 = vmatprep.mubr.bf16.mxu0 0
        %973 = vmatmul.mubr.bf16.gmra.mrb[0].mxu0 %v722
        %v974 = vpop.f32.mrb[0].mxu0
        %v975 = vadd.f32 0.0, %v974
        %v976 = vpop.f32.mrb[0].mxu0
        %v977 = vpop.f32.mrb[0].mxu0
        %v978 = vpop.f32.mrb[0].mxu0
        %v979 = vadd.f32 0.0, %v978
        %980 = vmatprep.mubr.bf16.mxu0 0
        %981 = vmatmul.mubr.bf16.gmra.mrb[0].mxu0 %v723
        %v982 = vpop.f32.mrb[0].mxu0
        %v983 = vadd.f32 0.0, %v982
        %v984 = vpop.f32.mrb[0].mxu0
        %v985 = vpop.f32.mrb[0].mxu0
        %v986 = vpop.f32.mrb[0].mxu0
        %v987 = vadd.f32 0.0, %v986
        %988 = vmatprep.mubr.bf16.mxu0 0
        %989 = vmatmul.mubr.bf16.gmra.mrb[0].mxu0 %v724
        %v990 = vpop.f32.mrb[0].mxu0
        %v991 = vadd.f32 0.0, %v990
        %v992 = vpop.f32.mrb[0].mxu0
        %v993 = vpop.f32.mrb[0].mxu0
        %v994 = vpop.f32.mrb[0].mxu0
        %v995 = vadd.f32 0.0, %v994
        %996 = vmatprep.mubr.bf16.mxu0 0
        %997 = vmatmul.mubr.bf16.gmra.mrb[0].mxu0 %v725
        %v998 = vpop.f32.mrb[0].mxu0
        %v999 = vadd.f32 0.0, %v998
        %v1000 = vpop.f32.mrb[0].mxu0
        %v1001 = vpop.f32.mrb[0].mxu0
        %v1002 = vpop.f32.mrb[0].mxu0
        %v1003 = vadd.f32 0.0, %v1002
        %1004 = vmatprep.mubr.bf16.mxu0 0
        %1005 = vmatmul.mubr.bf16.gmra.mrb[0].mxu0 %v726
        %v1006 = vpop.f32.mrb[0].mxu0
        %v1007 = vadd.f32 0.0, %v1006
        %v1008 = vpop.f32.mrb[0].mxu0
        %v1009 = vpop.f32.mrb[0].mxu0
        %v1010 = vpop.f32.mrb[0].mxu0
        %v1011 = vadd.f32 0.0, %v1010
        %1012 = vmatprep.mubr.bf16.mxu0 0
        %1013 = vmatmul.mubr.bf16.gmra.mrb[0].mxu0 %v727
        %v1014 = vpop.f32.mrb[0].mxu0
        %v1015 = vadd.f32 0.0, %v1014
        %v1016 = vpop.f32.mrb[0].mxu0
        %v1017 = vpop.f32.mrb[0].mxu0
        %v1018 = vpop.f32.mrb[0].mxu0
        %v1019 = vadd.f32 0.0, %v1018
        %1020 = vmatprep.mubr.bf16.mxu0 0
        %1021 = vmatmul.mubr.bf16.gmra.mrb[0].mxu0 %v728
        %v1022 = vpop.f32.mrb[0].mxu0
        %v1023 = vadd.f32 0.0, %v1022
        %v1024 = vpop.f32.mrb[0].mxu0
        %v1025 = vpop.f32.mrb[0].mxu0
        %v1026 = vpop.f32.mrb[0].mxu0
        %v1027 = vadd.f32 0.0, %v1026
        %1028 = vmatprep.mubr.bf16.mxu0 0
        %1029 = vmatmul.mubr.bf16.gmra.mrb[0].mxu0 %v729
        %v1030 = vpop.f32.mrb[0].mxu0
        %v1031 = vadd.f32 0.0, %v1030
        %v1032 = vpop.f32.mrb[0].mxu0
        %v1033 = vpop.f32.mrb[0].mxu0
        %v1034 = vpop.f32.mrb[0].mxu0
        %v1035 = vadd.f32 0.0, %v1034
        %1036 = vmatprep.mubr.bf16.mxu0 0
        %1037 = vmatmul.mubr.bf16.gmra.mrb[0].mxu0 %v730
        %v1038 = vpop.f32.mrb[0].mxu0
        %v1039 = vadd.f32 0.0, %v1038
        %v1040 = vpop.f32.mrb[0].mxu0
        %v1041 = vpop.f32.mrb[0].mxu0
        %v1042 = vpop.f32.mrb[0].mxu0
        %v1043 = vadd.f32 0.0, %v1042
        %1044 = vmatprep.mubr.bf16.mxu0 0
        %1045 = vmatmul.mubr.bf16.gmra.mrb[0].mxu0 %v731
        %v1046 = vpop.f32.mrb[0].mxu0
        %v1047 = vadd.f32 0.0, %v1046
        %v1048 = vpop.f32.mrb[0].mxu0
        %v1049 = vpop.f32.mrb[0].mxu0
        %v1050 = vpop.f32.mrb[0].mxu0
        %v1051 = vadd.f32 0.0, %v1050
        %1052 = vdwg.mxu0
        %v1053 = vld [vmem:[%s3] sm:$0xf]
        %v1054 = vld [vmem:[%s4] sm:$0x1]
        %v1055 = vlaneseq
        %v1056 = vshrl.u32 %v1055, 7
        %v1057 = vsub.s32 0, %v1056
        %v1058 = vrot.slane %v1053, %v1057
        %v1059 = vmul.f32 %v554, %v1058
        %v1060 = vmul.f32 %v558, %v1058
        %v1061 = vmul.f32 %v564, %v1058
        %v1062 = vmul.f32 %v568, %v1058
        %1063 = vadd.xlane.f32.xlu0 %v1059
        %v1064 = vpop.xlane.xlu0 %1063
        %1065 = vadd.xlane.f32.xlu0 %v1060
        %v1066 = vpop.xlane.xlu0 %1065
        %1067 = vadd.xlane.f32.xlu0 %v1061
        %v1068 = vpop.xlane.xlu0 %1067
        %1069 = vadd.xlane.f32.xlu0 %v1062
        %v1070 = vpop.xlane.xlu0 %1069
        %v1071 = vlaneseq
        %v1072 = vshrl.u32 %v1071, 7
        %v1073 = vsub.s32 1, %v1072
        %v1074 = vrot.slane %v1053, %v1073
        %v1075 = vmul.f32 %v799, %v1074
        %v1076 = vmul.f32 %v807, %v1074
        %v1077 = vmul.f32 %v815, %v1074
        %v1078 = vmul.f32 %v823, %v1074
        %v1079 = vmul.f32 %v831, %v1074
        %v1080 = vmul.f32 %v839, %v1074
        %v1081 = vmul.f32 %v847, %v1074
        %v1082 = vmul.f32 %v855, %v1074
        %v1083 = vmul.f32 %v863, %v1074
        %v1084 = vmul.f32 %v871, %v1074
        %v1085 = vmul.f32 %v879, %v1074
        %v1086 = vmul.f32 %v887, %v1074
        %v1087 = vmul.f32 %v895, %v1074
        %v1088 = vmul.f32 %v903, %v1074
        %v1089 = vmul.f32 %v911, %v1074
        %v1090 = vmul.f32 %v919, %v1074
        %v1091 = vmul.f32 %v927, %v1074
        %v1092 = vmul.f32 %v935, %v1074
        %v1093 = vmul.f32 %v943, %v1074
        %v1094 = vmul.f32 %v951, %v1074
        %v1095 = vmul.f32 %v959, %v1074
        %v1096 = vmul.f32 %v967, %v1074
        %v1097 = vmul.f32 %v975, %v1074
        %v1098 = vmul.f32 %v983, %v1074
        %v1099 = vmul.f32 %v991, %v1074
        %v1100 = vmul.f32 %v999, %v1074
        %v1101 = vmul.f32 %v1007, %v1074
        %v1102 = vmul.f32 %v1015, %v1074
        %v1103 = vmul.f32 %v1023, %v1074
        %v1104 = vmul.f32 %v1031, %v1074
        %v1105 = vmul.f32 %v1039, %v1074
        %v1106 = vmul.f32 %v1047, %v1074
        %1107 = vadd.xlane.f32.xlu0 %v1075
        %v1108 = vpop.xlane.xlu0 %1107
        %1109 = vadd.xlane.f32.xlu0 %v1076
        %v1110 = vpop.xlane.xlu0 %1109
        %1111 = vadd.xlane.f32.xlu0 %v1077
        %v1112 = vpop.xlane.xlu0 %1111
        %1113 = vadd.xlane.f32.xlu0 %v1078
        %v1114 = vpop.xlane.xlu0 %1113
        %1115 = vadd.xlane.f32.xlu0 %v1079
        %v1116 = vpop.xlane.xlu0 %1115
        %1117 = vadd.xlane.f32.xlu0 %v1080
        %v1118 = vpop.xlane.xlu0 %1117
        %1119 = vadd.xlane.f32.xlu0 %v1081
        %v1120 = vpop.xlane.xlu0 %1119
        %1121 = vadd.xlane.f32.xlu0 %v1082
        %v1122 = vpop.xlane.xlu0 %1121
        %1123 = vadd.xlane.f32.xlu0 %v1083
        %v1124 = vpop.xlane.xlu0 %1123
        %1125 = vadd.xlane.f32.xlu0 %v1084
        %v1126 = vpop.xlane.xlu0 %1125
        %1127 = vadd.xlane.f32.xlu0 %v1085
        %v1128 = vpop.xlane.xlu0 %1127
        %1129 = vadd.xlane.f32.xlu0 %v1086
        %v1130 = vpop.xlane.xlu0 %1129
        %1131 = vadd.xlane.f32.xlu0 %v1087
        %v1132 = vpop.xlane.xlu0 %1131
        %1133 = vadd.xlane.f32.xlu0 %v1088
        %v1134 = vpop.xlane.xlu0 %1133
        %1135 = vadd.xlane.f32.xlu0 %v1089
        %v1136 = vpop.xlane.xlu0 %1135
        %1137 = vadd.xlane.f32.xlu0 %v1090
        %v1138 = vpop.xlane.xlu0 %1137
        %1139 = vadd.xlane.f32.xlu0 %v1091
        %v1140 = vpop.xlane.xlu0 %1139
        %1141 = vadd.xlane.f32.xlu0 %v1092
        %v1142 = vpop.xlane.xlu0 %1141
        %1143 = vadd.xlane.f32.xlu0 %v1093
        %v1144 = vpop.xlane.xlu0 %1143
        %1145 = vadd.xlane.f32.xlu0 %v1094
        %v1146 = vpop.xlane.xlu0 %1145
        %1147 = vadd.xlane.f32.xlu0 %v1095
        %v1148 = vpop.xlane.xlu0 %1147
        %1149 = vadd.xlane.f32.xlu0 %v1096
        %v1150 = vpop.xlane.xlu0 %1149
        %1151 = vadd.xlane.f32.xlu0 %v1097
        %v1152 = vpop.xlane.xlu0 %1151
        %1153 = vadd.xlane.f32.xlu0 %v1098
        %v1154 = vpop.xlane.xlu0 %1153
        %1155 = vadd.xlane.f32.xlu0 %v1099
        %v1156 = vpop.xlane.xlu0 %1155
        %1157 = vadd.xlane.f32.xlu0 %v1100
        %v1158 = vpop.xlane.xlu0 %1157
        %1159 = vadd.xlane.f32.xlu0 %v1101
        %v1160 = vpop.xlane.xlu0 %1159
        %1161 = vadd.xlane.f32.xlu0 %v1102
        %v1162 = vpop.xlane.xlu0 %1161
        %1163 = vadd.xlane.f32.xlu0 %v1103
        %v1164 = vpop.xlane.xlu0 %1163
        %1165 = vadd.xlane.f32.xlu0 %v1104
        %v1166 = vpop.xlane.xlu0 %1165
        %1167 = vadd.xlane.f32.xlu0 %v1105
        %v1168 = vpop.xlane.xlu0 %1167
        %1169 = vadd.xlane.f32.xlu0 %v1106
        %v1170 = vpop.xlane.xlu0 %1169
        %v1203 = vlaneseq
        %v1204 = vand.u32 %v1203, 127
        %v1205 = vlaneseq
        %v1206 = vshrl.u32 %v1205, 7
        %v1207 = vsub.s32 %v1204, %v1206
        %v1208 = vrot.slane %v1108, %v1207
        %v1209 = vlaneseq
        %v1210 = vshrl.u32 %v1209, 7
        %v1211 = vsub.s32 %v1204, %v1210
        %v1212 = vrot.slane %v1110, %v1211
        %v1213 = vlaneseq
        %v1214 = vshrl.u32 %v1213, 7
        %v1215 = vsub.s32 %v1204, %v1214
        %v1216 = vrot.slane %v1112, %v1215
        %v1217 = vlaneseq
        %v1218 = vshrl.u32 %v1217, 7
        %v1219 = vsub.s32 %v1204, %v1218
        %v1220 = vrot.slane %v1114, %v1219
        %v1221 = vlaneseq
        %v1222 = vshrl.u32 %v1221, 7
        %v1223 = vsub.s32 %v1204, %v1222
        %v1224 = vrot.slane %v1116, %v1223
        %v1225 = vlaneseq
        %v1226 = vshrl.u32 %v1225, 7
        %v1227 = vsub.s32 %v1204, %v1226
        %v1228 = vrot.slane %v1118, %v1227
        %v1229 = vlaneseq
        %v1230 = vshrl.u32 %v1229, 7
        %v1231 = vsub.s32 %v1204, %v1230
        %v1232 = vrot.slane %v1120, %v1231
        %v1233 = vlaneseq
        %v1234 = vshrl.u32 %v1233, 7
        %v1235 = vsub.s32 %v1204, %v1234
        %v1236 = vrot.slane %v1122, %v1235
        %v1237 = vlaneseq
        %v1238 = vshrl.u32 %v1237, 7
        %v1239 = vsub.s32 %v1204, %v1238
        %v1240 = vrot.slane %v1124, %v1239
        %v1241 = vlaneseq
        %v1242 = vshrl.u32 %v1241, 7
        %v1243 = vsub.s32 %v1204, %v1242
        %v1244 = vrot.slane %v1126, %v1243
        %v1245 = vlaneseq
        %v1246 = vshrl.u32 %v1245, 7
        %v1247 = vsub.s32 %v1204, %v1246
        %v1248 = vrot.slane %v1128, %v1247
        %v1249 = vlaneseq
        %v1250 = vshrl.u32 %v1249, 7
        %v1251 = vsub.s32 %v1204, %v1250
        %v1252 = vrot.slane %v1130, %v1251
        %v1253 = vlaneseq
        %v1254 = vshrl.u32 %v1253, 7
        %v1255 = vsub.s32 %v1204, %v1254
        %v1256 = vrot.slane %v1132, %v1255
        %v1257 = vlaneseq
        %v1258 = vshrl.u32 %v1257, 7
        %v1259 = vsub.s32 %v1204, %v1258
        %v1260 = vrot.slane %v1134, %v1259
        %v1261 = vlaneseq
        %v1262 = vshrl.u32 %v1261, 7
        %v1263 = vsub.s32 %v1204, %v1262
        %v1264 = vrot.slane %v1136, %v1263
        %v1265 = vlaneseq
        %v1266 = vshrl.u32 %v1265, 7
        %v1267 = vsub.s32 %v1204, %v1266
        %v1268 = vrot.slane %v1138, %v1267
        %v1269 = vlaneseq
        %v1270 = vshrl.u32 %v1269, 7
        %v1271 = vsub.s32 %v1204, %v1270
        %v1272 = vrot.slane %v1140, %v1271
        %v1273 = vlaneseq
        %v1274 = vshrl.u32 %v1273, 7
        %v1275 = vsub.s32 %v1204, %v1274
        %v1276 = vrot.slane %v1142, %v1275
        %v1277 = vlaneseq
        %v1278 = vshrl.u32 %v1277, 7
        %v1279 = vsub.s32 %v1204, %v1278
        %v1280 = vrot.slane %v1144, %v1279
        %v1281 = vlaneseq
        %v1282 = vshrl.u32 %v1281, 7
        %v1283 = vsub.s32 %v1204, %v1282
        %v1284 = vrot.slane %v1146, %v1283
        %v1285 = vlaneseq
        %v1286 = vshrl.u32 %v1285, 7
        %v1287 = vsub.s32 %v1204, %v1286
        %v1288 = vrot.slane %v1148, %v1287
        %v1289 = vlaneseq
        %v1290 = vshrl.u32 %v1289, 7
        %v1291 = vsub.s32 %v1204, %v1290
        %v1292 = vrot.slane %v1150, %v1291
        %v1293 = vlaneseq
        %v1294 = vshrl.u32 %v1293, 7
        %v1295 = vsub.s32 %v1204, %v1294
        %v1296 = vrot.slane %v1152, %v1295
        %v1297 = vlaneseq
        %v1298 = vshrl.u32 %v1297, 7
        %v1299 = vsub.s32 %v1204, %v1298
        %v1300 = vrot.slane %v1154, %v1299
        %v1301 = vlaneseq
        %v1302 = vshrl.u32 %v1301, 7
        %v1303 = vsub.s32 %v1204, %v1302
        %v1304 = vrot.slane %v1156, %v1303
        %v1305 = vlaneseq
        %v1306 = vshrl.u32 %v1305, 7
        %v1307 = vsub.s32 %v1204, %v1306
        %v1308 = vrot.slane %v1158, %v1307
        %v1309 = vlaneseq
        %v1310 = vshrl.u32 %v1309, 7
        %v1311 = vsub.s32 %v1204, %v1310
        %v1312 = vrot.slane %v1160, %v1311
        %v1313 = vlaneseq
        %v1314 = vshrl.u32 %v1313, 7
        %v1315 = vsub.s32 %v1204, %v1314
        %v1316 = vrot.slane %v1162, %v1315
        %v1317 = vlaneseq
        %v1318 = vshrl.u32 %v1317, 7
        %v1319 = vsub.s32 %v1204, %v1318
        %v1320 = vrot.slane %v1164, %v1319
        %v1321 = vlaneseq
        %v1322 = vshrl.u32 %v1321, 7
        %v1323 = vsub.s32 %v1204, %v1322
        %v1324 = vrot.slane %v1166, %v1323
        %v1325 = vlaneseq
        %v1326 = vshrl.u32 %v1325, 7
        %v1327 = vsub.s32 %v1204, %v1326
        %v1328 = vrot.slane %v1168, %v1327
        %v1329 = vlaneseq
        %v1330 = vshrl.u32 %v1329, 7
        %v1331 = vsub.s32 %v1204, %v1330
        %v1332 = vrot.slane %v1170, %v1331
        %vm1333 = vcmask 1041409
        %v1334 = vsel %vm1333, %v1212, %v1208
        %vm1335 = vcmask 1042434
        %v1336 = vsel %vm1335, %v1216, %v1334
        %vm1337 = vcmask 1043459
        %v1338 = vsel %vm1337, %v1220, %v1336
        %vm1339 = vcmask 1044484
        %v1340 = vsel %vm1339, %v1224, %v1338
        %vm1341 = vcmask 1045509
        %v1342 = vsel %vm1341, %v1228, %v1340
        %vm1343 = vcmask 1046534
        %v1344 = vsel %vm1343, %v1232, %v1342
        %vm1345 = vcmask 1047559
        %v1346 = vsel %vm1345, %v1236, %v1344
        %v1347 = vsel %vm1333, %v1244, %v1240
        %v1348 = vsel %vm1335, %v1248, %v1347
        %v1349 = vsel %vm1337, %v1252, %v1348
        %v1350 = vsel %vm1339, %v1256, %v1349
        %v1351 = vsel %vm1341, %v1260, %v1350
        %v1352 = vsel %vm1343, %v1264, %v1351
        %v1353 = vsel %vm1345, %v1268, %v1352
        %v1354 = vsel %vm1333, %v1276, %v1272
        %v1355 = vsel %vm1335, %v1280, %v1354
        %v1356 = vsel %vm1337, %v1284, %v1355
        %v1357 = vsel %vm1339, %v1288, %v1356
        %v1358 = vsel %vm1341, %v1292, %v1357
        %v1359 = vsel %vm1343, %v1296, %v1358
        %v1360 = vsel %vm1345, %v1300, %v1359
        %v1361 = vsel %vm1333, %v1308, %v1304
        %v1362 = vsel %vm1335, %v1312, %v1361
        %v1363 = vsel %vm1337, %v1316, %v1362
        %v1364 = vsel %vm1339, %v1320, %v1363
        %v1365 = vsel %vm1341, %v1324, %v1364
        %v1366 = vsel %vm1343, %v1328, %v1365
        %v1367 = vsel %vm1345, %v1332, %v1366
        %v1372 = vadd.f32 %v1064, %v1346
        %v1373 = vadd.f32 %v1066, %v1353
        %v1374 = vadd.f32 %v1068, %v1360
        %v1375 = vadd.f32 %v1070, %v1367
        %vm1376 = vcmp.gt.f32.partialorder %v1372, 0.0
        %vm1377 = vcmp.gt.f32.partialorder %v1373, 0.0
        %vm1378 = vcmp.gt.f32.partialorder %v1374, 0.0
        %vm1379 = vcmp.gt.f32.partialorder %v1375, 0.0
        %v1380 = vmul.f32 %v1372, 0.2
        %v1381 = vmul.f32 %v1373, 0.2
        %v1382 = vmul.f32 %v1374, 0.2
        %v1383 = vmul.f32 %v1375, 0.2
        %v1384 = vsel %vm1376, %v1372, %v1380
        %v1385 = vsel %vm1377, %v1373, %v1381
        %v1386 = vsel %vm1378, %v1374, %v1382
        %v1387 = vsel %vm1379, %v1375, %v1383
        %vm1388 = vcmask 64512
        %v1389 = vsel %vm1388, %v1384, -inf
        %1390 = vmax.xlane.f32.xlu0 %v1389
        %v1391 = vpop.xlane.xlu0 %1390
        %v1392 = vsel %vm1388, %v1385, -inf
        %1393 = vmax.xlane.f32.xlu0 %v1392
        %v1394 = vpop.xlane.xlu0 %1393
        %v1395 = vsel %vm1388, %v1386, -inf
        %1396 = vmax.xlane.f32.xlu0 %v1395
        %v1397 = vpop.xlane.xlu0 %1396
        %v1398 = vsel %vm1388, %v1387, -inf
        %1399 = vmax.xlane.f32.xlu0 %v1398
        %v1400 = vpop.xlane.xlu0 %1399
        %v1401 = vsub.f32 %v1384, %v1391
        %v1402 = vsub.f32 %v1385, %v1394
        %v1403 = vsub.f32 %v1386, %v1397
        %v1404 = vsub.f32 %v1387, %v1400
        %v1405 = vmul.f32 %v1401, 1.442695
        %v1406 = vpow.pop %v1405
        %v1407 = vmul.f32 %v1402, 1.442695
        %v1408 = vpow.pop %v1407
        %v1409 = vmul.f32 %v1403, 1.442695
        %v1410 = vpow.pop %v1409
        %v1411 = vmul.f32 %v1404, 1.442695
        %v1412 = vpow.pop %v1411
        %v1413 = vsel %vm1388, %v1406, 0.0
        %1414 = vadd.xlane.f32.xlu0 %v1413
        %v1415 = vpop.xlane.xlu0 %1414
        %v1416 = vsel %vm1388, %v1408, 0.0
        %1417 = vadd.xlane.f32.xlu0 %v1416
        %v1418 = vpop.xlane.xlu0 %1417
        %v1419 = vsel %vm1388, %v1410, 0.0
        %1420 = vadd.xlane.f32.xlu0 %v1419
        %v1421 = vpop.xlane.xlu0 %1420
        %v1422 = vsel %vm1388, %v1412, 0.0
        %1423 = vadd.xlane.f32.xlu0 %v1422
        %v1424 = vpop.xlane.xlu0 %1423
        %v1425 = vrcp.pop %v1415
        %v1426 = vmul.f32 %v1406, %v1425
        %v1427 = vrcp.pop %v1418
        %v1428 = vmul.f32 %v1408, %v1427
        %v1429 = vrcp.pop %v1421
        %v1430 = vmul.f32 %v1410, %v1429
        %v1431 = vrcp.pop %v1424
        %v1432 = vmul.f32 %v1412, %v1431
        %v1433 = vlaneseq
        %v1434 = vshrl.u32 %v1433, 7
        %v1435 = vsub.s32 0, %v1434
        %v1436 = vrot.slane %v1426, %v1435
        %1438 = vbcast.lane.b32.xlu0 %v1436, 256
        %v1439 = vpop.permute.xlu0 %1438
        %v1440 = vlaneseq
        %v1441 = vshrl.u32 %v1440, 7
        %v1442 = vsub.s32 1, %v1441
        %v1443 = vrot.slane %v1426, %v1442
        %1445 = vbcast.lane.b32.xlu0 %v1443, 256
        %v1446 = vpop.permute.xlu0 %1445
        %v1447 = vlaneseq
        %v1448 = vshrl.u32 %v1447, 7
        %v1449 = vsub.s32 2, %v1448
        %v1450 = vrot.slane %v1426, %v1449
        %1452 = vbcast.lane.b32.xlu0 %v1450, 256
        %v1453 = vpop.permute.xlu0 %1452
        %v1454 = vlaneseq
        %v1455 = vshrl.u32 %v1454, 7
        %v1456 = vsub.s32 3, %v1455
        %v1457 = vrot.slane %v1426, %v1456
        %1459 = vbcast.lane.b32.xlu0 %v1457, 256
        %v1460 = vpop.permute.xlu0 %1459
        %v1461 = vlaneseq
        %v1462 = vshrl.u32 %v1461, 7
        %v1463 = vsub.s32 4, %v1462
        %v1464 = vrot.slane %v1426, %v1463
        %1466 = vbcast.lane.b32.xlu0 %v1464, 256
        %v1467 = vpop.permute.xlu0 %1466
        %v1468 = vlaneseq
        %v1469 = vshrl.u32 %v1468, 7
        %v1470 = vsub.s32 5, %v1469
        %v1471 = vrot.slane %v1426, %v1470
        %1473 = vbcast.lane.b32.xlu0 %v1471, 256
        %v1474 = vpop.permute.xlu0 %1473
        %v1475 = vlaneseq
        %v1476 = vshrl.u32 %v1475, 7
        %v1477 = vsub.s32 6, %v1476
        %v1478 = vrot.slane %v1426, %v1477
        %1480 = vbcast.lane.b32.xlu0 %v1478, 256
        %v1481 = vpop.permute.xlu0 %1480
        %v1482 = vlaneseq
        %v1483 = vshrl.u32 %v1482, 7
        %v1484 = vsub.s32 7, %v1483
        %v1485 = vrot.slane %v1426, %v1484
        %1487 = vbcast.lane.b32.xlu0 %v1485, 256
        %v1488 = vpop.permute.xlu0 %1487
        %v1489 = vlaneseq
        %v1490 = vshrl.u32 %v1489, 7
        %v1491 = vsub.s32 0, %v1490
        %v1492 = vrot.slane %v1428, %v1491
        %1494 = vbcast.lane.b32.xlu0 %v1492, 256
        %v1495 = vpop.permute.xlu0 %1494
        %v1496 = vlaneseq
        %v1497 = vshrl.u32 %v1496, 7
        %v1498 = vsub.s32 1, %v1497
        %v1499 = vrot.slane %v1428, %v1498
        %1501 = vbcast.lane.b32.xlu0 %v1499, 256
        %v1502 = vpop.permute.xlu0 %1501
        %v1503 = vlaneseq
        %v1504 = vshrl.u32 %v1503, 7
        %v1505 = vsub.s32 2, %v1504
        %v1506 = vrot.slane %v1428, %v1505
        %1508 = vbcast.lane.b32.xlu0 %v1506, 256
        %v1509 = vpop.permute.xlu0 %1508
        %v1510 = vlaneseq
        %v1511 = vshrl.u32 %v1510, 7
        %v1512 = vsub.s32 3, %v1511
        %v1513 = vrot.slane %v1428, %v1512
        %1515 = vbcast.lane.b32.xlu0 %v1513, 256
        %v1516 = vpop.permute.xlu0 %1515
        %v1517 = vlaneseq
        %v1518 = vshrl.u32 %v1517, 7
        %v1519 = vsub.s32 4, %v1518
        %v1520 = vrot.slane %v1428, %v1519
        %1522 = vbcast.lane.b32.xlu0 %v1520, 256
        %v1523 = vpop.permute.xlu0 %1522
        %v1524 = vlaneseq
        %v1525 = vshrl.u32 %v1524, 7
        %v1526 = vsub.s32 5, %v1525
        %v1527 = vrot.slane %v1428, %v1526
        %1529 = vbcast.lane.b32.xlu0 %v1527, 256
        %v1530 = vpop.permute.xlu0 %1529
        %v1531 = vlaneseq
        %v1532 = vshrl.u32 %v1531, 7
        %v1533 = vsub.s32 6, %v1532
        %v1534 = vrot.slane %v1428, %v1533
        %1536 = vbcast.lane.b32.xlu0 %v1534, 256
        %v1537 = vpop.permute.xlu0 %1536
        %v1538 = vlaneseq
        %v1539 = vshrl.u32 %v1538, 7
        %v1540 = vsub.s32 7, %v1539
        %v1541 = vrot.slane %v1428, %v1540
        %1543 = vbcast.lane.b32.xlu0 %v1541, 256
        %v1544 = vpop.permute.xlu0 %1543
        %v1545 = vlaneseq
        %v1546 = vshrl.u32 %v1545, 7
        %v1547 = vsub.s32 0, %v1546
        %v1548 = vrot.slane %v1430, %v1547
        %1550 = vbcast.lane.b32.xlu0 %v1548, 256
        %v1551 = vpop.permute.xlu0 %1550
        %v1552 = vlaneseq
        %v1553 = vshrl.u32 %v1552, 7
        %v1554 = vsub.s32 1, %v1553
        %v1555 = vrot.slane %v1430, %v1554
        %1557 = vbcast.lane.b32.xlu0 %v1555, 256
        %v1558 = vpop.permute.xlu0 %1557
        %v1559 = vlaneseq
        %v1560 = vshrl.u32 %v1559, 7
        %v1561 = vsub.s32 2, %v1560
        %v1562 = vrot.slane %v1430, %v1561
        %1564 = vbcast.lane.b32.xlu0 %v1562, 256
        %v1565 = vpop.permute.xlu0 %1564
        %v1566 = vlaneseq
        %v1567 = vshrl.u32 %v1566, 7
        %v1568 = vsub.s32 3, %v1567
        %v1569 = vrot.slane %v1430, %v1568
        %1571 = vbcast.lane.b32.xlu0 %v1569, 256
        %v1572 = vpop.permute.xlu0 %1571
        %v1573 = vlaneseq
        %v1574 = vshrl.u32 %v1573, 7
        %v1575 = vsub.s32 4, %v1574
        %v1576 = vrot.slane %v1430, %v1575
        %1578 = vbcast.lane.b32.xlu0 %v1576, 256
        %v1579 = vpop.permute.xlu0 %1578
        %v1580 = vlaneseq
        %v1581 = vshrl.u32 %v1580, 7
        %v1582 = vsub.s32 5, %v1581
        %v1583 = vrot.slane %v1430, %v1582
        %1585 = vbcast.lane.b32.xlu0 %v1583, 256
        %v1586 = vpop.permute.xlu0 %1585
        %v1587 = vlaneseq
        %v1588 = vshrl.u32 %v1587, 7
        %v1589 = vsub.s32 6, %v1588
        %v1590 = vrot.slane %v1430, %v1589
        %1592 = vbcast.lane.b32.xlu0 %v1590, 256
        %v1593 = vpop.permute.xlu0 %1592
        %v1594 = vlaneseq
        %v1595 = vshrl.u32 %v1594, 7
        %v1596 = vsub.s32 7, %v1595
        %v1597 = vrot.slane %v1430, %v1596
        %1599 = vbcast.lane.b32.xlu0 %v1597, 256
        %v1600 = vpop.permute.xlu0 %1599
        %v1601 = vlaneseq
        %v1602 = vshrl.u32 %v1601, 7
        %v1603 = vsub.s32 0, %v1602
        %v1604 = vrot.slane %v1432, %v1603
        %1606 = vbcast.lane.b32.xlu0 %v1604, 256
        %v1607 = vpop.permute.xlu0 %1606
        %v1608 = vlaneseq
        %v1609 = vshrl.u32 %v1608, 7
        %v1610 = vsub.s32 1, %v1609
        %v1611 = vrot.slane %v1432, %v1610
        %1613 = vbcast.lane.b32.xlu0 %v1611, 256
        %v1614 = vpop.permute.xlu0 %1613
        %v1615 = vlaneseq
        %v1616 = vshrl.u32 %v1615, 7
        %v1617 = vsub.s32 2, %v1616
        %v1618 = vrot.slane %v1432, %v1617
        %1620 = vbcast.lane.b32.xlu0 %v1618, 256
        %v1621 = vpop.permute.xlu0 %1620
        %v1622 = vlaneseq
        %v1623 = vshrl.u32 %v1622, 7
        %v1624 = vsub.s32 3, %v1623
        %v1625 = vrot.slane %v1432, %v1624
        %1627 = vbcast.lane.b32.xlu0 %v1625, 256
        %v1628 = vpop.permute.xlu0 %1627
        %v1629 = vlaneseq
        %v1630 = vshrl.u32 %v1629, 7
        %v1631 = vsub.s32 4, %v1630
        %v1632 = vrot.slane %v1432, %v1631
        %1634 = vbcast.lane.b32.xlu0 %v1632, 256
        %v1635 = vpop.permute.xlu0 %1634
        %v1636 = vlaneseq
        %v1637 = vshrl.u32 %v1636, 7
        %v1638 = vsub.s32 5, %v1637
        %v1639 = vrot.slane %v1432, %v1638
        %1641 = vbcast.lane.b32.xlu0 %v1639, 256
        %v1642 = vpop.permute.xlu0 %1641
        %v1643 = vlaneseq
        %v1644 = vshrl.u32 %v1643, 7
        %v1645 = vsub.s32 6, %v1644
        %v1646 = vrot.slane %v1432, %v1645
        %1648 = vbcast.lane.b32.xlu0 %v1646, 256
        %v1649 = vpop.permute.xlu0 %1648
        %v1650 = vlaneseq
        %v1651 = vshrl.u32 %v1650, 7
        %v1652 = vsub.s32 7, %v1651
        %v1653 = vrot.slane %v1432, %v1652
        %1655 = vbcast.lane.b32.xlu0 %v1653, 256
        %v1656 = vpop.permute.xlu0 %1655
        %v1657 = vmul.f32 %v1439, %v799
        %v1658 = vmul.f32 %v1446, %v807
        %v1659 = vmul.f32 %v1453, %v815
        %v1660 = vmul.f32 %v1460, %v823
        %v1661 = vmul.f32 %v1467, %v831
        %v1662 = vmul.f32 %v1474, %v839
        %v1663 = vmul.f32 %v1481, %v847
        %v1664 = vmul.f32 %v1488, %v855
        %v1665 = vmul.f32 %v1495, %v863
        %v1666 = vmul.f32 %v1502, %v871
        %v1667 = vmul.f32 %v1509, %v879
        %v1668 = vmul.f32 %v1516, %v887
        %v1669 = vmul.f32 %v1523, %v895
        %v1670 = vmul.f32 %v1530, %v903
        %v1671 = vmul.f32 %v1537, %v911
        %v1672 = vmul.f32 %v1544, %v919
        %v1673 = vmul.f32 %v1551, %v927
        %v1674 = vmul.f32 %v1558, %v935
        %v1675 = vmul.f32 %v1565, %v943
        %v1676 = vmul.f32 %v1572, %v951
        %v1677 = vmul.f32 %v1579, %v959
        %v1678 = vmul.f32 %v1586, %v967
        %v1679 = vmul.f32 %v1593, %v975
        %v1680 = vmul.f32 %v1600, %v983
        %v1681 = vmul.f32 %v1607, %v991
        %v1682 = vmul.f32 %v1614, %v999
        %v1683 = vmul.f32 %v1621, %v1007
        %v1684 = vmul.f32 %v1628, %v1015
        %v1685 = vmul.f32 %v1635, %v1023
        %v1686 = vmul.f32 %v1642, %v1031
        %v1687 = vmul.f32 %v1649, %v1039
        %v1688 = vmul.f32 %v1656, %v1047
        %v1689 = vrot.slane %v1657, 4
        %v1690 = vadd.f32 %v1657, %v1689
        %v1691 = vrot.slane %v1690, 2
        %v1692 = vadd.f32 %v1690, %v1691
        %v1693 = vrot.slane %v1692, 1
        %v1694 = vadd.f32 %v1692, %v1693
        %v1695 = vrot.slane %v1658, 4
        %v1696 = vadd.f32 %v1658, %v1695
        %v1697 = vrot.slane %v1696, 2
        %v1698 = vadd.f32 %v1696, %v1697
        %v1699 = vrot.slane %v1698, 1
        %v1700 = vadd.f32 %v1698, %v1699
        %v1701 = vrot.slane %v1659, 4
        %v1702 = vadd.f32 %v1659, %v1701
        %v1703 = vrot.slane %v1702, 2
        %v1704 = vadd.f32 %v1702, %v1703
        %v1705 = vrot.slane %v1704, 1
        %v1706 = vadd.f32 %v1704, %v1705
        %v1707 = vrot.slane %v1660, 4
        %v1708 = vadd.f32 %v1660, %v1707
        %v1709 = vrot.slane %v1708, 2
        %v1710 = vadd.f32 %v1708, %v1709
        %v1711 = vrot.slane %v1710, 1
        %v1712 = vadd.f32 %v1710, %v1711
        %v1713 = vrot.slane %v1661, 4
        %v1714 = vadd.f32 %v1661, %v1713
        %v1715 = vrot.slane %v1714, 2
        %v1716 = vadd.f32 %v1714, %v1715
        %v1717 = vrot.slane %v1716, 1
        %v1718 = vadd.f32 %v1716, %v1717
        %v1719 = vrot.slane %v1662, 4
        %v1720 = vadd.f32 %v1662, %v1719
        %v1721 = vrot.slane %v1720, 2
        %v1722 = vadd.f32 %v1720, %v1721
        %v1723 = vrot.slane %v1722, 1
        %v1724 = vadd.f32 %v1722, %v1723
        %v1725 = vrot.slane %v1663, 4
        %v1726 = vadd.f32 %v1663, %v1725
        %v1727 = vrot.slane %v1726, 2
        %v1728 = vadd.f32 %v1726, %v1727
        %v1729 = vrot.slane %v1728, 1
        %v1730 = vadd.f32 %v1728, %v1729
        %v1731 = vrot.slane %v1664, 4
        %v1732 = vadd.f32 %v1664, %v1731
        %v1733 = vrot.slane %v1732, 2
        %v1734 = vadd.f32 %v1732, %v1733
        %v1735 = vrot.slane %v1734, 1
        %v1736 = vadd.f32 %v1734, %v1735
        %v1737 = vrot.slane %v1665, 4
        %v1738 = vadd.f32 %v1665, %v1737
        %v1739 = vrot.slane %v1738, 2
        %v1740 = vadd.f32 %v1738, %v1739
        %v1741 = vrot.slane %v1740, 1
        %v1742 = vadd.f32 %v1740, %v1741
        %v1743 = vrot.slane %v1666, 4
        %v1744 = vadd.f32 %v1666, %v1743
        %v1745 = vrot.slane %v1744, 2
        %v1746 = vadd.f32 %v1744, %v1745
        %v1747 = vrot.slane %v1746, 1
        %v1748 = vadd.f32 %v1746, %v1747
        %v1749 = vrot.slane %v1667, 4
        %v1750 = vadd.f32 %v1667, %v1749
        %v1751 = vrot.slane %v1750, 2
        %v1752 = vadd.f32 %v1750, %v1751
        %v1753 = vrot.slane %v1752, 1
        %v1754 = vadd.f32 %v1752, %v1753
        %v1755 = vrot.slane %v1668, 4
        %v1756 = vadd.f32 %v1668, %v1755
        %v1757 = vrot.slane %v1756, 2
        %v1758 = vadd.f32 %v1756, %v1757
        %v1759 = vrot.slane %v1758, 1
        %v1760 = vadd.f32 %v1758, %v1759
        %v1761 = vrot.slane %v1669, 4
        %v1762 = vadd.f32 %v1669, %v1761
        %v1763 = vrot.slane %v1762, 2
        %v1764 = vadd.f32 %v1762, %v1763
        %v1765 = vrot.slane %v1764, 1
        %v1766 = vadd.f32 %v1764, %v1765
        %v1767 = vrot.slane %v1670, 4
        %v1768 = vadd.f32 %v1670, %v1767
        %v1769 = vrot.slane %v1768, 2
        %v1770 = vadd.f32 %v1768, %v1769
        %v1771 = vrot.slane %v1770, 1
        %v1772 = vadd.f32 %v1770, %v1771
        %v1773 = vrot.slane %v1671, 4
        %v1774 = vadd.f32 %v1671, %v1773
        %v1775 = vrot.slane %v1774, 2
        %v1776 = vadd.f32 %v1774, %v1775
        %v1777 = vrot.slane %v1776, 1
        %v1778 = vadd.f32 %v1776, %v1777
        %v1779 = vrot.slane %v1672, 4
        %v1780 = vadd.f32 %v1672, %v1779
        %v1781 = vrot.slane %v1780, 2
        %v1782 = vadd.f32 %v1780, %v1781
        %v1783 = vrot.slane %v1782, 1
        %v1784 = vadd.f32 %v1782, %v1783
        %v1785 = vrot.slane %v1673, 4
        %v1786 = vadd.f32 %v1673, %v1785
        %v1787 = vrot.slane %v1786, 2
        %v1788 = vadd.f32 %v1786, %v1787
        %v1789 = vrot.slane %v1788, 1
        %v1790 = vadd.f32 %v1788, %v1789
        %v1791 = vrot.slane %v1674, 4
        %v1792 = vadd.f32 %v1674, %v1791
        %v1793 = vrot.slane %v1792, 2
        %v1794 = vadd.f32 %v1792, %v1793
        %v1795 = vrot.slane %v1794, 1
        %v1796 = vadd.f32 %v1794, %v1795
        %v1797 = vrot.slane %v1675, 4
        %v1798 = vadd.f32 %v1675, %v1797
        %v1799 = vrot.slane %v1798, 2
        %v1800 = vadd.f32 %v1798, %v1799
        %v1801 = vrot.slane %v1800, 1
        %v1802 = vadd.f32 %v1800, %v1801
        %v1803 = vrot.slane %v1676, 4
        %v1804 = vadd.f32 %v1676, %v1803
        %v1805 = vrot.slane %v1804, 2
        %v1806 = vadd.f32 %v1804, %v1805
        %v1807 = vrot.slane %v1806, 1
        %v1808 = vadd.f32 %v1806, %v1807
        %v1809 = vrot.slane %v1677, 4
        %v1810 = vadd.f32 %v1677, %v1809
        %v1811 = vrot.slane %v1810, 2
        %v1812 = vadd.f32 %v1810, %v1811
        %v1813 = vrot.slane %v1812, 1
        %v1814 = vadd.f32 %v1812, %v1813
        %v1815 = vrot.slane %v1678, 4
        %v1816 = vadd.f32 %v1678, %v1815
        %v1817 = vrot.slane %v1816, 2
        %v1818 = vadd.f32 %v1816, %v1817
        %v1819 = vrot.slane %v1818, 1
        %v1820 = vadd.f32 %v1818, %v1819
        %v1821 = vrot.slane %v1679, 4
        %v1822 = vadd.f32 %v1679, %v1821
        %v1823 = vrot.slane %v1822, 2
        %v1824 = vadd.f32 %v1822, %v1823
        %v1825 = vrot.slane %v1824, 1
        %v1826 = vadd.f32 %v1824, %v1825
        %v1827 = vrot.slane %v1680, 4
        %v1828 = vadd.f32 %v1680, %v1827
        %v1829 = vrot.slane %v1828, 2
        %v1830 = vadd.f32 %v1828, %v1829
        %v1831 = vrot.slane %v1830, 1
        %v1832 = vadd.f32 %v1830, %v1831
        %v1833 = vrot.slane %v1681, 4
        %v1834 = vadd.f32 %v1681, %v1833
        %v1835 = vrot.slane %v1834, 2
        %v1836 = vadd.f32 %v1834, %v1835
        %v1837 = vrot.slane %v1836, 1
        %v1838 = vadd.f32 %v1836, %v1837
        %v1839 = vrot.slane %v1682, 4
        %v1840 = vadd.f32 %v1682, %v1839
        %v1841 = vrot.slane %v1840, 2
        %v1842 = vadd.f32 %v1840, %v1841
        %v1843 = vrot.slane %v1842, 1
        %v1844 = vadd.f32 %v1842, %v1843
        %v1845 = vrot.slane %v1683, 4
        %v1846 = vadd.f32 %v1683, %v1845
        %v1847 = vrot.slane %v1846, 2
        %v1848 = vadd.f32 %v1846, %v1847
        %v1849 = vrot.slane %v1848, 1
        %v1850 = vadd.f32 %v1848, %v1849
        %v1851 = vrot.slane %v1684, 4
        %v1852 = vadd.f32 %v1684, %v1851
        %v1853 = vrot.slane %v1852, 2
        %v1854 = vadd.f32 %v1852, %v1853
        %v1855 = vrot.slane %v1854, 1
        %v1856 = vadd.f32 %v1854, %v1855
        %v1857 = vrot.slane %v1685, 4
        %v1858 = vadd.f32 %v1685, %v1857
        %v1859 = vrot.slane %v1858, 2
        %v1860 = vadd.f32 %v1858, %v1859
        %v1861 = vrot.slane %v1860, 1
        %v1862 = vadd.f32 %v1860, %v1861
        %v1863 = vrot.slane %v1686, 4
        %v1864 = vadd.f32 %v1686, %v1863
        %v1865 = vrot.slane %v1864, 2
        %v1866 = vadd.f32 %v1864, %v1865
        %v1867 = vrot.slane %v1866, 1
        %v1868 = vadd.f32 %v1866, %v1867
        %v1869 = vrot.slane %v1687, 4
        %v1870 = vadd.f32 %v1687, %v1869
        %v1871 = vrot.slane %v1870, 2
        %v1872 = vadd.f32 %v1870, %v1871
        %v1873 = vrot.slane %v1872, 1
        %v1874 = vadd.f32 %v1872, %v1873
        %v1875 = vrot.slane %v1688, 4
        %v1876 = vadd.f32 %v1688, %v1875
        %v1877 = vrot.slane %v1876, 2
        %v1878 = vadd.f32 %v1876, %v1877
        %v1879 = vrot.slane %v1878, 1
        %v1880 = vadd.f32 %v1878, %v1879
        %v1881 = vlaneseq
        %v1882 = vshrl.u32 %v1881, 7
        %v1883 = vsub.s32 2, %v1882
        %v1884 = vrot.slane %v1053, %v1883
        %v1885 = vmul.f32 %v556, %v1884
        %v1886 = vmul.f32 %v560, %v1884
        %v1887 = vmul.f32 %v566, %v1884
        %v1888 = vmul.f32 %v570, %v1884
        %1889 = vadd.xlane.f32.xlu0 %v1885
        %v1890 = vpop.xlane.xlu0 %1889
        %1891 = vadd.xlane.f32.xlu0 %v1886
        %v1892 = vpop.xlane.xlu0 %1891
        %1893 = vadd.xlane.f32.xlu0 %v1887
        %v1894 = vpop.xlane.xlu0 %1893
        %1895 = vadd.xlane.f32.xlu0 %v1888
        %v1896 = vpop.xlane.xlu0 %1895
        %v1897 = vlaneseq
        %v1898 = vshrl.u32 %v1897, 7
        %v1899 = vsub.s32 3, %v1898
        %v1900 = vrot.slane %v1053, %v1899
        %v1901 = vmul.f32 %v803, %v1900
        %v1902 = vmul.f32 %v811, %v1900
        %v1903 = vmul.f32 %v819, %v1900
        %v1904 = vmul.f32 %v827, %v1900
        %v1905 = vmul.f32 %v835, %v1900
        %v1906 = vmul.f32 %v843, %v1900
        %v1907 = vmul.f32 %v851, %v1900
        %v1908 = vmul.f32 %v859, %v1900
        %v1909 = vmul.f32 %v867, %v1900
        %v1910 = vmul.f32 %v875, %v1900
        %v1911 = vmul.f32 %v883, %v1900
        %v1912 = vmul.f32 %v891, %v1900
        %v1913 = vmul.f32 %v899, %v1900
        %v1914 = vmul.f32 %v907, %v1900
        %v1915 = vmul.f32 %v915, %v1900
        %v1916 = vmul.f32 %v923, %v1900
        %v1917 = vmul.f32 %v931, %v1900
        %v1918 = vmul.f32 %v939, %v1900
        %v1919 = vmul.f32 %v947, %v1900
        %v1920 = vmul.f32 %v955, %v1900
        %v1921 = vmul.f32 %v963, %v1900
        %v1922 = vmul.f32 %v971, %v1900
        %v1923 = vmul.f32 %v979, %v1900
        %v1924 = vmul.f32 %v987, %v1900
        %v1925 = vmul.f32 %v995, %v1900
        %v1926 = vmul.f32 %v1003, %v1900
        %v1927 = vmul.f32 %v1011, %v1900
        %v1928 = vmul.f32 %v1019, %v1900
        %v1929 = vmul.f32 %v1027, %v1900
        %v1930 = vmul.f32 %v1035, %v1900
        %v1931 = vmul.f32 %v1043, %v1900
        %v1932 = vmul.f32 %v1051, %v1900
        %1933 = vadd.xlane.f32.xlu0 %v1901
        %v1934 = vpop.xlane.xlu0 %1933
        %1935 = vadd.xlane.f32.xlu0 %v1902
        %v1936 = vpop.xlane.xlu0 %1935
        %1937 = vadd.xlane.f32.xlu0 %v1903
        %v1938 = vpop.xlane.xlu0 %1937
        %1939 = vadd.xlane.f32.xlu0 %v1904
        %v1940 = vpop.xlane.xlu0 %1939
        %1941 = vadd.xlane.f32.xlu0 %v1905
        %v1942 = vpop.xlane.xlu0 %1941
        %1943 = vadd.xlane.f32.xlu0 %v1906
        %v1944 = vpop.xlane.xlu0 %1943
        %1945 = vadd.xlane.f32.xlu0 %v1907
        %v1946 = vpop.xlane.xlu0 %1945
        %1947 = vadd.xlane.f32.xlu0 %v1908
        %v1948 = vpop.xlane.xlu0 %1947
        %1949 = vadd.xlane.f32.xlu0 %v1909
        %v1950 = vpop.xlane.xlu0 %1949
        %1951 = vadd.xlane.f32.xlu0 %v1910
        %v1952 = vpop.xlane.xlu0 %1951
        %1953 = vadd.xlane.f32.xlu0 %v1911
        %v1954 = vpop.xlane.xlu0 %1953
        %1955 = vadd.xlane.f32.xlu0 %v1912
        %v1956 = vpop.xlane.xlu0 %1955
        %1957 = vadd.xlane.f32.xlu0 %v1913
        %v1958 = vpop.xlane.xlu0 %1957
        %1959 = vadd.xlane.f32.xlu0 %v1914
        %v1960 = vpop.xlane.xlu0 %1959
        %1961 = vadd.xlane.f32.xlu0 %v1915
        %v1962 = vpop.xlane.xlu0 %1961
        %1963 = vadd.xlane.f32.xlu0 %v1916
        %v1964 = vpop.xlane.xlu0 %1963
        %1965 = vadd.xlane.f32.xlu0 %v1917
        %v1966 = vpop.xlane.xlu0 %1965
        %1967 = vadd.xlane.f32.xlu0 %v1918
        %v1968 = vpop.xlane.xlu0 %1967
        %1969 = vadd.xlane.f32.xlu0 %v1919
        %v1970 = vpop.xlane.xlu0 %1969
        %1971 = vadd.xlane.f32.xlu0 %v1920
        %v1972 = vpop.xlane.xlu0 %1971
        %1973 = vadd.xlane.f32.xlu0 %v1921
        %v1974 = vpop.xlane.xlu0 %1973
        %1975 = vadd.xlane.f32.xlu0 %v1922
        %v1976 = vpop.xlane.xlu0 %1975
        %1977 = vadd.xlane.f32.xlu0 %v1923
        %v1978 = vpop.xlane.xlu0 %1977
        %1979 = vadd.xlane.f32.xlu0 %v1924
        %v1980 = vpop.xlane.xlu0 %1979
        %1981 = vadd.xlane.f32.xlu0 %v1925
        %v1982 = vpop.xlane.xlu0 %1981
        %1983 = vadd.xlane.f32.xlu0 %v1926
        %v1984 = vpop.xlane.xlu0 %1983
        %1985 = vadd.xlane.f32.xlu0 %v1927
        %v1986 = vpop.xlane.xlu0 %1985
        %1987 = vadd.xlane.f32.xlu0 %v1928
        %v1988 = vpop.xlane.xlu0 %1987
        %1989 = vadd.xlane.f32.xlu0 %v1929
        %v1990 = vpop.xlane.xlu0 %1989
        %1991 = vadd.xlane.f32.xlu0 %v1930
        %v1992 = vpop.xlane.xlu0 %1991
        %1993 = vadd.xlane.f32.xlu0 %v1931
        %v1994 = vpop.xlane.xlu0 %1993
        %1995 = vadd.xlane.f32.xlu0 %v1932
        %v1996 = vpop.xlane.xlu0 %1995
        %v2029 = vlaneseq
        %v2030 = vshrl.u32 %v2029, 7
        %v2031 = vsub.s32 %v1204, %v2030
        %v2032 = vrot.slane %v1934, %v2031
        %v2033 = vlaneseq
        %v2034 = vshrl.u32 %v2033, 7
        %v2035 = vsub.s32 %v1204, %v2034
        %v2036 = vrot.slane %v1936, %v2035
        %v2037 = vlaneseq
        %v2038 = vshrl.u32 %v2037, 7
        %v2039 = vsub.s32 %v1204, %v2038
        %v2040 = vrot.slane %v1938, %v2039
        %v2041 = vlaneseq
        %v2042 = vshrl.u32 %v2041, 7
        %v2043 = vsub.s32 %v1204, %v2042
        %v2044 = vrot.slane %v1940, %v2043
        %v2045 = vlaneseq
        %v2046 = vshrl.u32 %v2045, 7
        %v2047 = vsub.s32 %v1204, %v2046
        %v2048 = vrot.slane %v1942, %v2047
        %v2049 = vlaneseq
        %v2050 = vshrl.u32 %v2049, 7
        %v2051 = vsub.s32 %v1204, %v2050
        %v2052 = vrot.slane %v1944, %v2051
        %v2053 = vlaneseq
        %v2054 = vshrl.u32 %v2053, 7
        %v2055 = vsub.s32 %v1204, %v2054
        %v2056 = vrot.slane %v1946, %v2055
        %v2057 = vlaneseq
        %v2058 = vshrl.u32 %v2057, 7
        %v2059 = vsub.s32 %v1204, %v2058
        %v2060 = vrot.slane %v1948, %v2059
        %v2061 = vlaneseq
        %v2062 = vshrl.u32 %v2061, 7
        %v2063 = vsub.s32 %v1204, %v2062
        %v2064 = vrot.slane %v1950, %v2063
        %v2065 = vlaneseq
        %v2066 = vshrl.u32 %v2065, 7
        %v2067 = vsub.s32 %v1204, %v2066
        %v2068 = vrot.slane %v1952, %v2067
        %v2069 = vlaneseq
        %v2070 = vshrl.u32 %v2069, 7
        %v2071 = vsub.s32 %v1204, %v2070
        %v2072 = vrot.slane %v1954, %v2071
        %v2073 = vlaneseq
        %v2074 = vshrl.u32 %v2073, 7
        %v2075 = vsub.s32 %v1204, %v2074
        %v2076 = vrot.slane %v1956, %v2075
        %v2077 = vlaneseq
        %v2078 = vshrl.u32 %v2077, 7
        %v2079 = vsub.s32 %v1204, %v2078
        %v2080 = vrot.slane %v1958, %v2079
        %v2081 = vlaneseq
        %v2082 = vshrl.u32 %v2081, 7
        %v2083 = vsub.s32 %v1204, %v2082
        %v2084 = vrot.slane %v1960, %v2083
        %v2085 = vlaneseq
        %v2086 = vshrl.u32 %v2085, 7
        %v2087 = vsub.s32 %v1204, %v2086
        %v2088 = vrot.slane %v1962, %v2087
        %v2089 = vlaneseq
        %v2090 = vshrl.u32 %v2089, 7
        %v2091 = vsub.s32 %v1204, %v2090
        %v2092 = vrot.slane %v1964, %v2091
        %v2093 = vlaneseq
        %v2094 = vshrl.u32 %v2093, 7
        %v2095 = vsub.s32 %v1204, %v2094
        %v2096 = vrot.slane %v1966, %v2095
        %v2097 = vlaneseq
        %v2098 = vshrl.u32 %v2097, 7
        %v2099 = vsub.s32 %v1204, %v2098
        %v2100 = vrot.slane %v1968, %v2099
        %v2101 = vlaneseq
        %v2102 = vshrl.u32 %v2101, 7
        %v2103 = vsub.s32 %v1204, %v2102
        %v2104 = vrot.slane %v1970, %v2103
        %v2105 = vlaneseq
        %v2106 = vshrl.u32 %v2105, 7
        %v2107 = vsub.s32 %v1204, %v2106
        %v2108 = vrot.slane %v1972, %v2107
        %v2109 = vlaneseq
        %v2110 = vshrl.u32 %v2109, 7
        %v2111 = vsub.s32 %v1204, %v2110
        %v2112 = vrot.slane %v1974, %v2111
        %v2113 = vlaneseq
        %v2114 = vshrl.u32 %v2113, 7
        %v2115 = vsub.s32 %v1204, %v2114
        %v2116 = vrot.slane %v1976, %v2115
        %v2117 = vlaneseq
        %v2118 = vshrl.u32 %v2117, 7
        %v2119 = vsub.s32 %v1204, %v2118
        %v2120 = vrot.slane %v1978, %v2119
        %v2121 = vlaneseq
        %v2122 = vshrl.u32 %v2121, 7
        %v2123 = vsub.s32 %v1204, %v2122
        %v2124 = vrot.slane %v1980, %v2123
        %v2125 = vlaneseq
        %v2126 = vshrl.u32 %v2125, 7
        %v2127 = vsub.s32 %v1204, %v2126
        %v2128 = vrot.slane %v1982, %v2127
        %v2129 = vlaneseq
        %v2130 = vshrl.u32 %v2129, 7
        %v2131 = vsub.s32 %v1204, %v2130
        %v2132 = vrot.slane %v1984, %v2131
        %v2133 = vlaneseq
        %v2134 = vshrl.u32 %v2133, 7
        %v2135 = vsub.s32 %v1204, %v2134
        %v2136 = vrot.slane %v1986, %v2135
        %v2137 = vlaneseq
        %v2138 = vshrl.u32 %v2137, 7
        %v2139 = vsub.s32 %v1204, %v2138
        %v2140 = vrot.slane %v1988, %v2139
        %v2141 = vlaneseq
        %v2142 = vshrl.u32 %v2141, 7
        %v2143 = vsub.s32 %v1204, %v2142
        %v2144 = vrot.slane %v1990, %v2143
        %v2145 = vlaneseq
        %v2146 = vshrl.u32 %v2145, 7
        %v2147 = vsub.s32 %v1204, %v2146
        %v2148 = vrot.slane %v1992, %v2147
        %v2149 = vlaneseq
        %v2150 = vshrl.u32 %v2149, 7
        %v2151 = vsub.s32 %v1204, %v2150
        %v2152 = vrot.slane %v1994, %v2151
        %v2153 = vlaneseq
        %v2154 = vshrl.u32 %v2153, 7
        %v2155 = vsub.s32 %v1204, %v2154
        %v2156 = vrot.slane %v1996, %v2155
        %v2157 = vsel %vm1333, %v2036, %v2032
        %v2158 = vsel %vm1335, %v2040, %v2157
        %v2159 = vsel %vm1337, %v2044, %v2158
        %v2160 = vsel %vm1339, %v2048, %v2159
        %v2161 = vsel %vm1341, %v2052, %v2160
        %v2162 = vsel %vm1343, %v2056, %v2161
        %v2163 = vsel %vm1345, %v2060, %v2162
        %v2164 = vsel %vm1333, %v2068, %v2064
        %v2165 = vsel %vm1335, %v2072, %v2164
        %v2166 = vsel %vm1337, %v2076, %v2165
        %v2167 = vsel %vm1339, %v2080, %v2166
        %v2168 = vsel %vm1341, %v2084, %v2167
        %v2169 = vsel %vm1343, %v2088, %v2168
        %v2170 = vsel %vm1345, %v2092, %v2169
        %v2171 = vsel %vm1333, %v2100, %v2096
        %v2172 = vsel %vm1335, %v2104, %v2171
        %v2173 = vsel %vm1337, %v2108, %v2172
        %v2174 = vsel %vm1339, %v2112, %v2173
        %v2175 = vsel %vm1341, %v2116, %v2174
        %v2176 = vsel %vm1343, %v2120, %v2175
        %v2177 = vsel %vm1345, %v2124, %v2176
        %v2178 = vsel %vm1333, %v2132, %v2128
        %v2179 = vsel %vm1335, %v2136, %v2178
        %v2180 = vsel %vm1337, %v2140, %v2179
        %v2181 = vsel %vm1339, %v2144, %v2180
        %v2182 = vsel %vm1341, %v2148, %v2181
        %v2183 = vsel %vm1343, %v2152, %v2182
        %v2184 = vsel %vm1345, %v2156, %v2183
        %v2189 = vadd.f32 %v1890, %v2163
        %v2190 = vadd.f32 %v1892, %v2170
        %v2191 = vadd.f32 %v1894, %v2177
        %v2192 = vadd.f32 %v1896, %v2184
        %vm2193 = vcmp.gt.f32.partialorder %v2189, 0.0
        %vm2194 = vcmp.gt.f32.partialorder %v2190, 0.0
        %vm2195 = vcmp.gt.f32.partialorder %v2191, 0.0
        %vm2196 = vcmp.gt.f32.partialorder %v2192, 0.0
        %v2197 = vmul.f32 %v2189, 0.2
        %v2198 = vmul.f32 %v2190, 0.2
        %v2199 = vmul.f32 %v2191, 0.2
        %v2200 = vmul.f32 %v2192, 0.2
        %v2201 = vsel %vm2193, %v2189, %v2197
        %v2202 = vsel %vm2194, %v2190, %v2198
        %v2203 = vsel %vm2195, %v2191, %v2199
        %v2204 = vsel %vm2196, %v2192, %v2200
        %v2205 = vsel %vm1388, %v2201, -inf
        %2206 = vmax.xlane.f32.xlu0 %v2205
        %v2207 = vpop.xlane.xlu0 %2206
        %v2208 = vsel %vm1388, %v2202, -inf
        %2209 = vmax.xlane.f32.xlu0 %v2208
        %v2210 = vpop.xlane.xlu0 %2209
        %v2211 = vsel %vm1388, %v2203, -inf
        %2212 = vmax.xlane.f32.xlu0 %v2211
        %v2213 = vpop.xlane.xlu0 %2212
        %v2214 = vsel %vm1388, %v2204, -inf
        %2215 = vmax.xlane.f32.xlu0 %v2214
        %v2216 = vpop.xlane.xlu0 %2215
        %v2217 = vsub.f32 %v2201, %v2207
        %v2218 = vsub.f32 %v2202, %v2210
        %v2219 = vsub.f32 %v2203, %v2213
        %v2220 = vsub.f32 %v2204, %v2216
        %v2221 = vmul.f32 %v2217, 1.442695
        %v2222 = vpow.pop %v2221
        %v2223 = vmul.f32 %v2218, 1.442695
        %v2224 = vpow.pop %v2223
        %v2225 = vmul.f32 %v2219, 1.442695
        %v2226 = vpow.pop %v2225
        %v2227 = vmul.f32 %v2220, 1.442695
        %v2228 = vpow.pop %v2227
        %v2229 = vsel %vm1388, %v2222, 0.0
        %2230 = vadd.xlane.f32.xlu0 %v2229
        %v2231 = vpop.xlane.xlu0 %2230
        %v2232 = vsel %vm1388, %v2224, 0.0
        %2233 = vadd.xlane.f32.xlu0 %v2232
        %v2234 = vpop.xlane.xlu0 %2233
        %v2235 = vsel %vm1388, %v2226, 0.0
        %2236 = vadd.xlane.f32.xlu0 %v2235
        %v2237 = vpop.xlane.xlu0 %2236
        %v2238 = vsel %vm1388, %v2228, 0.0
        %2239 = vadd.xlane.f32.xlu0 %v2238
        %v2240 = vpop.xlane.xlu0 %2239
        %v2241 = vrcp.pop %v2231
        %v2242 = vmul.f32 %v2222, %v2241
        %v2243 = vrcp.pop %v2234
        %v2244 = vmul.f32 %v2224, %v2243
        %v2245 = vrcp.pop %v2237
        %v2246 = vmul.f32 %v2226, %v2245
        %v2247 = vrcp.pop %v2240
        %v2248 = vmul.f32 %v2228, %v2247
        %v2249 = vlaneseq
        %v2250 = vshrl.u32 %v2249, 7
        %v2251 = vsub.s32 0, %v2250
        %v2252 = vrot.slane %v2242, %v2251
        %2254 = vbcast.lane.b32.xlu0 %v2252, 256
        %v2255 = vpop.permute.xlu0 %2254
        %v2256 = vlaneseq
        %v2257 = vshrl.u32 %v2256, 7
        %v2258 = vsub.s32 1, %v2257
        %v2259 = vrot.slane %v2242, %v2258
        %2261 = vbcast.lane.b32.xlu0 %v2259, 256
        %v2262 = vpop.permute.xlu0 %2261
        %v2263 = vlaneseq
        %v2264 = vshrl.u32 %v2263, 7
        %v2265 = vsub.s32 2, %v2264
        %v2266 = vrot.slane %v2242, %v2265
        %2268 = vbcast.lane.b32.xlu0 %v2266, 256
        %v2269 = vpop.permute.xlu0 %2268
        %v2270 = vlaneseq
        %v2271 = vshrl.u32 %v2270, 7
        %v2272 = vsub.s32 3, %v2271
        %v2273 = vrot.slane %v2242, %v2272
        %2275 = vbcast.lane.b32.xlu0 %v2273, 256
        %v2276 = vpop.permute.xlu0 %2275
        %v2277 = vlaneseq
        %v2278 = vshrl.u32 %v2277, 7
        %v2279 = vsub.s32 4, %v2278
        %v2280 = vrot.slane %v2242, %v2279
        %2282 = vbcast.lane.b32.xlu0 %v2280, 256
        %v2283 = vpop.permute.xlu0 %2282
        %v2284 = vlaneseq
        %v2285 = vshrl.u32 %v2284, 7
        %v2286 = vsub.s32 5, %v2285
        %v2287 = vrot.slane %v2242, %v2286
        %2289 = vbcast.lane.b32.xlu0 %v2287, 256
        %v2290 = vpop.permute.xlu0 %2289
        %v2291 = vlaneseq
        %v2292 = vshrl.u32 %v2291, 7
        %v2293 = vsub.s32 6, %v2292
        %v2294 = vrot.slane %v2242, %v2293
        %2296 = vbcast.lane.b32.xlu0 %v2294, 256
        %v2297 = vpop.permute.xlu0 %2296
        %v2298 = vlaneseq
        %v2299 = vshrl.u32 %v2298, 7
        %v2300 = vsub.s32 7, %v2299
        %v2301 = vrot.slane %v2242, %v2300
        %2303 = vbcast.lane.b32.xlu0 %v2301, 256
        %v2304 = vpop.permute.xlu0 %2303
        %v2305 = vlaneseq
        %v2306 = vshrl.u32 %v2305, 7
        %v2307 = vsub.s32 0, %v2306
        %v2308 = vrot.slane %v2244, %v2307
        %2310 = vbcast.lane.b32.xlu0 %v2308, 256
        %v2311 = vpop.permute.xlu0 %2310
        %v2312 = vlaneseq
        %v2313 = vshrl.u32 %v2312, 7
        %v2314 = vsub.s32 1, %v2313
        %v2315 = vrot.slane %v2244, %v2314
        %2317 = vbcast.lane.b32.xlu0 %v2315, 256
        %v2318 = vpop.permute.xlu0 %2317
        %v2319 = vlaneseq
        %v2320 = vshrl.u32 %v2319, 7
        %v2321 = vsub.s32 2, %v2320
        %v2322 = vrot.slane %v2244, %v2321
        %2324 = vbcast.lane.b32.xlu0 %v2322, 256
        %v2325 = vpop.permute.xlu0 %2324
        %v2326 = vlaneseq
        %v2327 = vshrl.u32 %v2326, 7
        %v2328 = vsub.s32 3, %v2327
        %v2329 = vrot.slane %v2244, %v2328
        %2331 = vbcast.lane.b32.xlu0 %v2329, 256
        %v2332 = vpop.permute.xlu0 %2331
        %v2333 = vlaneseq
        %v2334 = vshrl.u32 %v2333, 7
        %v2335 = vsub.s32 4, %v2334
        %v2336 = vrot.slane %v2244, %v2335
        %2338 = vbcast.lane.b32.xlu0 %v2336, 256
        %v2339 = vpop.permute.xlu0 %2338
        %v2340 = vlaneseq
        %v2341 = vshrl.u32 %v2340, 7
        %v2342 = vsub.s32 5, %v2341
        %v2343 = vrot.slane %v2244, %v2342
        %2345 = vbcast.lane.b32.xlu0 %v2343, 256
        %v2346 = vpop.permute.xlu0 %2345
        %v2347 = vlaneseq
        %v2348 = vshrl.u32 %v2347, 7
        %v2349 = vsub.s32 6, %v2348
        %v2350 = vrot.slane %v2244, %v2349
        %2352 = vbcast.lane.b32.xlu0 %v2350, 256
        %v2353 = vpop.permute.xlu0 %2352
        %v2354 = vlaneseq
        %v2355 = vshrl.u32 %v2354, 7
        %v2356 = vsub.s32 7, %v2355
        %v2357 = vrot.slane %v2244, %v2356
        %2359 = vbcast.lane.b32.xlu0 %v2357, 256
        %v2360 = vpop.permute.xlu0 %2359
        %v2361 = vlaneseq
        %v2362 = vshrl.u32 %v2361, 7
        %v2363 = vsub.s32 0, %v2362
        %v2364 = vrot.slane %v2246, %v2363
        %2366 = vbcast.lane.b32.xlu0 %v2364, 256
        %v2367 = vpop.permute.xlu0 %2366
        %v2368 = vlaneseq
        %v2369 = vshrl.u32 %v2368, 7
        %v2370 = vsub.s32 1, %v2369
        %v2371 = vrot.slane %v2246, %v2370
        %2373 = vbcast.lane.b32.xlu0 %v2371, 256
        %v2374 = vpop.permute.xlu0 %2373
        %v2375 = vlaneseq
        %v2376 = vshrl.u32 %v2375, 7
        %v2377 = vsub.s32 2, %v2376
        %v2378 = vrot.slane %v2246, %v2377
        %2380 = vbcast.lane.b32.xlu0 %v2378, 256
        %v2381 = vpop.permute.xlu0 %2380
        %v2382 = vlaneseq
        %v2383 = vshrl.u32 %v2382, 7
        %v2384 = vsub.s32 3, %v2383
        %v2385 = vrot.slane %v2246, %v2384
        %2387 = vbcast.lane.b32.xlu0 %v2385, 256
        %v2388 = vpop.permute.xlu0 %2387
        %v2389 = vlaneseq
        %v2390 = vshrl.u32 %v2389, 7
        %v2391 = vsub.s32 4, %v2390
        %v2392 = vrot.slane %v2246, %v2391
        %2394 = vbcast.lane.b32.xlu0 %v2392, 256
        %v2395 = vpop.permute.xlu0 %2394
        %v2396 = vlaneseq
        %v2397 = vshrl.u32 %v2396, 7
        %v2398 = vsub.s32 5, %v2397
        %v2399 = vrot.slane %v2246, %v2398
        %2401 = vbcast.lane.b32.xlu0 %v2399, 256
        %v2402 = vpop.permute.xlu0 %2401
        %v2403 = vlaneseq
        %v2404 = vshrl.u32 %v2403, 7
        %v2405 = vsub.s32 6, %v2404
        %v2406 = vrot.slane %v2246, %v2405
        %2408 = vbcast.lane.b32.xlu0 %v2406, 256
        %v2409 = vpop.permute.xlu0 %2408
        %v2410 = vlaneseq
        %v2411 = vshrl.u32 %v2410, 7
        %v2412 = vsub.s32 7, %v2411
        %v2413 = vrot.slane %v2246, %v2412
        %2415 = vbcast.lane.b32.xlu0 %v2413, 256
        %v2416 = vpop.permute.xlu0 %2415
        %v2417 = vlaneseq
        %v2418 = vshrl.u32 %v2417, 7
        %v2419 = vsub.s32 0, %v2418
        %v2420 = vrot.slane %v2248, %v2419
        %2422 = vbcast.lane.b32.xlu0 %v2420, 256
        %v2423 = vpop.permute.xlu0 %2422
        %v2424 = vlaneseq
        %v2425 = vshrl.u32 %v2424, 7
        %v2426 = vsub.s32 1, %v2425
        %v2427 = vrot.slane %v2248, %v2426
        %2429 = vbcast.lane.b32.xlu0 %v2427, 256
        %v2430 = vpop.permute.xlu0 %2429
        %v2431 = vlaneseq
        %v2432 = vshrl.u32 %v2431, 7
        %v2433 = vsub.s32 2, %v2432
        %v2434 = vrot.slane %v2248, %v2433
        %2436 = vbcast.lane.b32.xlu0 %v2434, 256
        %v2437 = vpop.permute.xlu0 %2436
        %v2438 = vlaneseq
        %v2439 = vshrl.u32 %v2438, 7
        %v2440 = vsub.s32 3, %v2439
        %v2441 = vrot.slane %v2248, %v2440
        %2443 = vbcast.lane.b32.xlu0 %v2441, 256
        %v2444 = vpop.permute.xlu0 %2443
        %v2445 = vlaneseq
        %v2446 = vshrl.u32 %v2445, 7
        %v2447 = vsub.s32 4, %v2446
        %v2448 = vrot.slane %v2248, %v2447
        %2450 = vbcast.lane.b32.xlu0 %v2448, 256
        %v2451 = vpop.permute.xlu0 %2450
        %v2452 = vlaneseq
        %v2453 = vshrl.u32 %v2452, 7
        %v2454 = vsub.s32 5, %v2453
        %v2455 = vrot.slane %v2248, %v2454
        %2457 = vbcast.lane.b32.xlu0 %v2455, 256
        %v2458 = vpop.permute.xlu0 %2457
        %v2459 = vlaneseq
        %v2460 = vshrl.u32 %v2459, 7
        %v2461 = vsub.s32 6, %v2460
        %v2462 = vrot.slane %v2248, %v2461
        %2464 = vbcast.lane.b32.xlu0 %v2462, 256
        %v2465 = vpop.permute.xlu0 %2464
        %v2466 = vlaneseq
        %v2467 = vshrl.u32 %v2466, 7
        %v2468 = vsub.s32 7, %v2467
        %v2469 = vrot.slane %v2248, %v2468
        %2471 = vbcast.lane.b32.xlu0 %v2469, 256
        %v2472 = vpop.permute.xlu0 %2471
        %v2473 = vmul.f32 %v2255, %v803
        %v2474 = vmul.f32 %v2262, %v811
        %v2475 = vmul.f32 %v2269, %v819
        %v2476 = vmul.f32 %v2276, %v827
        %v2477 = vmul.f32 %v2283, %v835
        %v2478 = vmul.f32 %v2290, %v843
        %v2479 = vmul.f32 %v2297, %v851
        %v2480 = vmul.f32 %v2304, %v859
        %v2481 = vmul.f32 %v2311, %v867
        %v2482 = vmul.f32 %v2318, %v875
        %v2483 = vmul.f32 %v2325, %v883
        %v2484 = vmul.f32 %v2332, %v891
        %v2485 = vmul.f32 %v2339, %v899
        %v2486 = vmul.f32 %v2346, %v907
        %v2487 = vmul.f32 %v2353, %v915
        %v2488 = vmul.f32 %v2360, %v923
        %v2489 = vmul.f32 %v2367, %v931
        %v2490 = vmul.f32 %v2374, %v939
        %v2491 = vmul.f32 %v2381, %v947
        %v2492 = vmul.f32 %v2388, %v955
        %v2493 = vmul.f32 %v2395, %v963
        %v2494 = vmul.f32 %v2402, %v971
        %v2495 = vmul.f32 %v2409, %v979
        %v2496 = vmul.f32 %v2416, %v987
        %v2497 = vmul.f32 %v2423, %v995
        %v2498 = vmul.f32 %v2430, %v1003
        %v2499 = vmul.f32 %v2437, %v1011
        %v2500 = vmul.f32 %v2444, %v1019
        %v2501 = vmul.f32 %v2451, %v1027
        %v2502 = vmul.f32 %v2458, %v1035
        %v2503 = vmul.f32 %v2465, %v1043
        %v2504 = vmul.f32 %v2472, %v1051
        %v2505 = vrot.slane %v2473, 4
        %v2506 = vadd.f32 %v2473, %v2505
        %v2507 = vrot.slane %v2506, 2
        %v2508 = vadd.f32 %v2506, %v2507
        %v2509 = vrot.slane %v2508, 1
        %v2510 = vadd.f32 %v2508, %v2509
        %v2511 = vrot.slane %v2474, 4
        %v2512 = vadd.f32 %v2474, %v2511
        %v2513 = vrot.slane %v2512, 2
        %v2514 = vadd.f32 %v2512, %v2513
        %v2515 = vrot.slane %v2514, 1
        %v2516 = vadd.f32 %v2514, %v2515
        %v2517 = vrot.slane %v2475, 4
        %v2518 = vadd.f32 %v2475, %v2517
        %v2519 = vrot.slane %v2518, 2
        %v2520 = vadd.f32 %v2518, %v2519
        %v2521 = vrot.slane %v2520, 1
        %v2522 = vadd.f32 %v2520, %v2521
        %v2523 = vrot.slane %v2476, 4
        %v2524 = vadd.f32 %v2476, %v2523
        %v2525 = vrot.slane %v2524, 2
        %v2526 = vadd.f32 %v2524, %v2525
        %v2527 = vrot.slane %v2526, 1
        %v2528 = vadd.f32 %v2526, %v2527
        %v2529 = vrot.slane %v2477, 4
        %v2530 = vadd.f32 %v2477, %v2529
        %v2531 = vrot.slane %v2530, 2
        %v2532 = vadd.f32 %v2530, %v2531
        %v2533 = vrot.slane %v2532, 1
        %v2534 = vadd.f32 %v2532, %v2533
        %v2535 = vrot.slane %v2478, 4
        %v2536 = vadd.f32 %v2478, %v2535
        %v2537 = vrot.slane %v2536, 2
        %v2538 = vadd.f32 %v2536, %v2537
        %v2539 = vrot.slane %v2538, 1
        %v2540 = vadd.f32 %v2538, %v2539
        %v2541 = vrot.slane %v2479, 4
        %v2542 = vadd.f32 %v2479, %v2541
        %v2543 = vrot.slane %v2542, 2
        %v2544 = vadd.f32 %v2542, %v2543
        %v2545 = vrot.slane %v2544, 1
        %v2546 = vadd.f32 %v2544, %v2545
        %v2547 = vrot.slane %v2480, 4
        %v2548 = vadd.f32 %v2480, %v2547
        %v2549 = vrot.slane %v2548, 2
        %v2550 = vadd.f32 %v2548, %v2549
        %v2551 = vrot.slane %v2550, 1
        %v2552 = vadd.f32 %v2550, %v2551
        %v2553 = vrot.slane %v2481, 4
        %v2554 = vadd.f32 %v2481, %v2553
        %v2555 = vrot.slane %v2554, 2
        %v2556 = vadd.f32 %v2554, %v2555
        %v2557 = vrot.slane %v2556, 1
        %v2558 = vadd.f32 %v2556, %v2557
        %v2559 = vrot.slane %v2482, 4
        %v2560 = vadd.f32 %v2482, %v2559
        %v2561 = vrot.slane %v2560, 2
        %v2562 = vadd.f32 %v2560, %v2561
        %v2563 = vrot.slane %v2562, 1
        %v2564 = vadd.f32 %v2562, %v2563
        %v2565 = vrot.slane %v2483, 4
        %v2566 = vadd.f32 %v2483, %v2565
        %v2567 = vrot.slane %v2566, 2
        %v2568 = vadd.f32 %v2566, %v2567
        %v2569 = vrot.slane %v2568, 1
        %v2570 = vadd.f32 %v2568, %v2569
        %v2571 = vrot.slane %v2484, 4
        %v2572 = vadd.f32 %v2484, %v2571
        %v2573 = vrot.slane %v2572, 2
        %v2574 = vadd.f32 %v2572, %v2573
        %v2575 = vrot.slane %v2574, 1
        %v2576 = vadd.f32 %v2574, %v2575
        %v2577 = vrot.slane %v2485, 4
        %v2578 = vadd.f32 %v2485, %v2577
        %v2579 = vrot.slane %v2578, 2
        %v2580 = vadd.f32 %v2578, %v2579
        %v2581 = vrot.slane %v2580, 1
        %v2582 = vadd.f32 %v2580, %v2581
        %v2583 = vrot.slane %v2486, 4
        %v2584 = vadd.f32 %v2486, %v2583
        %v2585 = vrot.slane %v2584, 2
        %v2586 = vadd.f32 %v2584, %v2585
        %v2587 = vrot.slane %v2586, 1
        %v2588 = vadd.f32 %v2586, %v2587
        %v2589 = vrot.slane %v2487, 4
        %v2590 = vadd.f32 %v2487, %v2589
        %v2591 = vrot.slane %v2590, 2
        %v2592 = vadd.f32 %v2590, %v2591
        %v2593 = vrot.slane %v2592, 1
        %v2594 = vadd.f32 %v2592, %v2593
        %v2595 = vrot.slane %v2488, 4
        %v2596 = vadd.f32 %v2488, %v2595
        %v2597 = vrot.slane %v2596, 2
        %v2598 = vadd.f32 %v2596, %v2597
        %v2599 = vrot.slane %v2598, 1
        %v2600 = vadd.f32 %v2598, %v2599
        %v2601 = vrot.slane %v2489, 4
        %v2602 = vadd.f32 %v2489, %v2601
        %v2603 = vrot.slane %v2602, 2
        %v2604 = vadd.f32 %v2602, %v2603
        %v2605 = vrot.slane %v2604, 1
        %v2606 = vadd.f32 %v2604, %v2605
        %v2607 = vrot.slane %v2490, 4
        %v2608 = vadd.f32 %v2490, %v2607
        %v2609 = vrot.slane %v2608, 2
        %v2610 = vadd.f32 %v2608, %v2609
        %v2611 = vrot.slane %v2610, 1
        %v2612 = vadd.f32 %v2610, %v2611
        %v2613 = vrot.slane %v2491, 4
        %v2614 = vadd.f32 %v2491, %v2613
        %v2615 = vrot.slane %v2614, 2
        %v2616 = vadd.f32 %v2614, %v2615
        %v2617 = vrot.slane %v2616, 1
        %v2618 = vadd.f32 %v2616, %v2617
        %v2619 = vrot.slane %v2492, 4
        %v2620 = vadd.f32 %v2492, %v2619
        %v2621 = vrot.slane %v2620, 2
        %v2622 = vadd.f32 %v2620, %v2621
        %v2623 = vrot.slane %v2622, 1
        %v2624 = vadd.f32 %v2622, %v2623
        %v2625 = vrot.slane %v2493, 4
        %v2626 = vadd.f32 %v2493, %v2625
        %v2627 = vrot.slane %v2626, 2
        %v2628 = vadd.f32 %v2626, %v2627
        %v2629 = vrot.slane %v2628, 1
        %v2630 = vadd.f32 %v2628, %v2629
        %v2631 = vrot.slane %v2494, 4
        %v2632 = vadd.f32 %v2494, %v2631
        %v2633 = vrot.slane %v2632, 2
        %v2634 = vadd.f32 %v2632, %v2633
        %v2635 = vrot.slane %v2634, 1
        %v2636 = vadd.f32 %v2634, %v2635
        %v2637 = vrot.slane %v2495, 4
        %v2638 = vadd.f32 %v2495, %v2637
        %v2639 = vrot.slane %v2638, 2
        %v2640 = vadd.f32 %v2638, %v2639
        %v2641 = vrot.slane %v2640, 1
        %v2642 = vadd.f32 %v2640, %v2641
        %v2643 = vrot.slane %v2496, 4
        %v2644 = vadd.f32 %v2496, %v2643
        %v2645 = vrot.slane %v2644, 2
        %v2646 = vadd.f32 %v2644, %v2645
        %v2647 = vrot.slane %v2646, 1
        %v2648 = vadd.f32 %v2646, %v2647
        %v2649 = vrot.slane %v2497, 4
        %v2650 = vadd.f32 %v2497, %v2649
        %v2651 = vrot.slane %v2650, 2
        %v2652 = vadd.f32 %v2650, %v2651
        %v2653 = vrot.slane %v2652, 1
        %v2654 = vadd.f32 %v2652, %v2653
        %v2655 = vrot.slane %v2498, 4
        %v2656 = vadd.f32 %v2498, %v2655
        %v2657 = vrot.slane %v2656, 2
        %v2658 = vadd.f32 %v2656, %v2657
        %v2659 = vrot.slane %v2658, 1
        %v2660 = vadd.f32 %v2658, %v2659
        %v2661 = vrot.slane %v2499, 4
        %v2662 = vadd.f32 %v2499, %v2661
        %v2663 = vrot.slane %v2662, 2
        %v2664 = vadd.f32 %v2662, %v2663
        %v2665 = vrot.slane %v2664, 1
        %v2666 = vadd.f32 %v2664, %v2665
        %v2667 = vrot.slane %v2500, 4
        %v2668 = vadd.f32 %v2500, %v2667
        %v2669 = vrot.slane %v2668, 2
        %v2670 = vadd.f32 %v2668, %v2669
        %v2671 = vrot.slane %v2670, 1
        %v2672 = vadd.f32 %v2670, %v2671
        %v2673 = vrot.slane %v2501, 4
        %v2674 = vadd.f32 %v2501, %v2673
        %v2675 = vrot.slane %v2674, 2
        %v2676 = vadd.f32 %v2674, %v2675
        %v2677 = vrot.slane %v2676, 1
        %v2678 = vadd.f32 %v2676, %v2677
        %v2679 = vrot.slane %v2502, 4
        %v2680 = vadd.f32 %v2502, %v2679
        %v2681 = vrot.slane %v2680, 2
        %v2682 = vadd.f32 %v2680, %v2681
        %v2683 = vrot.slane %v2682, 1
        %v2684 = vadd.f32 %v2682, %v2683
        %v2685 = vrot.slane %v2503, 4
        %v2686 = vadd.f32 %v2503, %v2685
        %v2687 = vrot.slane %v2686, 2
        %v2688 = vadd.f32 %v2686, %v2687
        %v2689 = vrot.slane %v2688, 1
        %v2690 = vadd.f32 %v2688, %v2689
        %v2691 = vrot.slane %v2504, 4
        %v2692 = vadd.f32 %v2504, %v2691
        %v2693 = vrot.slane %v2692, 2
        %v2694 = vadd.f32 %v2692, %v2693
        %v2695 = vrot.slane %v2694, 1
        %v2696 = vadd.f32 %v2694, %v2695
        %v2697 = vunpack.c.l.bf16 %v343
        %v2698 = vunpack.c.l.bf16 %v344
        %v2699 = vunpack.c.l.bf16 %v345
        %v2700 = vunpack.c.l.bf16 %v346
        %v2702 = vlaneseq
        %v2703 = vshrl.u32 %v2702, 7
        %v2704 = vsub.s32 0, %v2703
        %v2705 = vrot.slane %v1054, %v2704
        %v2707 = vmul.f32 %v1694, %v2705
        %v2708 = vmul.f32 %v1700, %v2705
        %v2709 = vmul.f32 %v1706, %v2705
        %v2710 = vmul.f32 %v1712, %v2705
        %v2711 = vmul.f32 %v1718, %v2705
        %v2712 = vmul.f32 %v1724, %v2705
        %v2713 = vmul.f32 %v1730, %v2705
        %v2714 = vmul.f32 %v1736, %v2705
        %v2715 = vmul.f32 %v1742, %v2705
        %v2716 = vmul.f32 %v1748, %v2705
        %v2717 = vmul.f32 %v1754, %v2705
        %v2718 = vmul.f32 %v1760, %v2705
        %v2719 = vmul.f32 %v1766, %v2705
        %v2720 = vmul.f32 %v1772, %v2705
        %v2721 = vmul.f32 %v1778, %v2705
        %v2722 = vmul.f32 %v1784, %v2705
        %v2723 = vmul.f32 %v1790, %v2705
        %v2724 = vmul.f32 %v1796, %v2705
        %v2725 = vmul.f32 %v1802, %v2705
        %v2726 = vmul.f32 %v1808, %v2705
        %v2727 = vmul.f32 %v1814, %v2705
        %v2728 = vmul.f32 %v1820, %v2705
        %v2729 = vmul.f32 %v1826, %v2705
        %v2730 = vmul.f32 %v1832, %v2705
        %v2731 = vmul.f32 %v1838, %v2705
        %v2732 = vmul.f32 %v1844, %v2705
        %v2733 = vmul.f32 %v1850, %v2705
        %v2734 = vmul.f32 %v1856, %v2705
        %v2735 = vmul.f32 %v1862, %v2705
        %v2736 = vmul.f32 %v1868, %v2705
        %v2737 = vmul.f32 %v1874, %v2705
        %v2738 = vmul.f32 %v1880, %v2705
        %v2771 = vrot.slane %v2708, 7
        %v2772 = vsel %vm1333, %v2771, %v2707
        %v2773 = vrot.slane %v2709, 6
        %v2774 = vsel %vm1335, %v2773, %v2772
        %v2775 = vrot.slane %v2710, 5
        %v2776 = vsel %vm1337, %v2775, %v2774
        %v2777 = vrot.slane %v2711, 4
        %v2778 = vsel %vm1339, %v2777, %v2776
        %v2779 = vrot.slane %v2712, 3
        %v2780 = vsel %vm1341, %v2779, %v2778
        %v2781 = vrot.slane %v2713, 2
        %v2782 = vsel %vm1343, %v2781, %v2780
        %v2783 = vrot.slane %v2714, 1
        %v2784 = vsel %vm1345, %v2783, %v2782
        %v2785 = vrot.slane %v2716, 7
        %v2786 = vsel %vm1333, %v2785, %v2715
        %v2787 = vrot.slane %v2717, 6
        %v2788 = vsel %vm1335, %v2787, %v2786
        %v2789 = vrot.slane %v2718, 5
        %v2790 = vsel %vm1337, %v2789, %v2788
        %v2791 = vrot.slane %v2719, 4
        %v2792 = vsel %vm1339, %v2791, %v2790
        %v2793 = vrot.slane %v2720, 3
        %v2794 = vsel %vm1341, %v2793, %v2792
        %v2795 = vrot.slane %v2721, 2
        %v2796 = vsel %vm1343, %v2795, %v2794
        %v2797 = vrot.slane %v2722, 1
        %v2798 = vsel %vm1345, %v2797, %v2796
        %v2799 = vrot.slane %v2724, 7
        %v2800 = vsel %vm1333, %v2799, %v2723
        %v2801 = vrot.slane %v2725, 6
        %v2802 = vsel %vm1335, %v2801, %v2800
        %v2803 = vrot.slane %v2726, 5
        %v2804 = vsel %vm1337, %v2803, %v2802
        %v2805 = vrot.slane %v2727, 4
        %v2806 = vsel %vm1339, %v2805, %v2804
        %v2807 = vrot.slane %v2728, 3
        %v2808 = vsel %vm1341, %v2807, %v2806
        %v2809 = vrot.slane %v2729, 2
        %v2810 = vsel %vm1343, %v2809, %v2808
        %v2811 = vrot.slane %v2730, 1
        %v2812 = vsel %vm1345, %v2811, %v2810
        %v2813 = vrot.slane %v2732, 7
        %v2814 = vsel %vm1333, %v2813, %v2731
        %v2815 = vrot.slane %v2733, 6
        %v2816 = vsel %vm1335, %v2815, %v2814
        %v2817 = vrot.slane %v2734, 5
        %v2818 = vsel %vm1337, %v2817, %v2816
        %v2819 = vrot.slane %v2735, 4
        %v2820 = vsel %vm1339, %v2819, %v2818
        %v2821 = vrot.slane %v2736, 3
        %v2822 = vsel %vm1341, %v2821, %v2820
        %v2823 = vrot.slane %v2737, 2
        %v2824 = vsel %vm1343, %v2823, %v2822
        %v2825 = vrot.slane %v2738, 1
        %v2826 = vsel %vm1345, %v2825, %v2824
        %2831 = vadd.xlane.f32.xlu0 %v2784
        %v2832 = vpop.xlane.xlu0 %2831
        %2833 = vadd.xlane.f32.xlu0 %v2798
        %v2834 = vpop.xlane.xlu0 %2833
        %2835 = vadd.xlane.f32.xlu0 %v2812
        %v2836 = vpop.xlane.xlu0 %2835
        %2837 = vadd.xlane.f32.xlu0 %v2826
        %v2838 = vpop.xlane.xlu0 %2837
        %s2839 = sld [smem:[#allocation9]]
        %v2840 = vstv %s2839
        %v2841 = vadd.f32 %v2832, %v2840
        %v2842 = vadd.f32 %v2834, %v2840
        %v2843 = vadd.f32 %v2836, %v2840
        %v2844 = vadd.f32 %v2838, %v2840
        %v2845 = vmul.f32 %v2510, %v2705
        %v2846 = vmul.f32 %v2516, %v2705
        %v2847 = vmul.f32 %v2522, %v2705
        %v2848 = vmul.f32 %v2528, %v2705
        %v2849 = vmul.f32 %v2534, %v2705
        %v2850 = vmul.f32 %v2540, %v2705
        %v2851 = vmul.f32 %v2546, %v2705
        %v2852 = vmul.f32 %v2552, %v2705
        %v2853 = vmul.f32 %v2558, %v2705
        %v2854 = vmul.f32 %v2564, %v2705
        %v2855 = vmul.f32 %v2570, %v2705
        %v2856 = vmul.f32 %v2576, %v2705
        %v2857 = vmul.f32 %v2582, %v2705
        %v2858 = vmul.f32 %v2588, %v2705
        %v2859 = vmul.f32 %v2594, %v2705
        %v2860 = vmul.f32 %v2600, %v2705
        %v2861 = vmul.f32 %v2606, %v2705
        %v2862 = vmul.f32 %v2612, %v2705
        %v2863 = vmul.f32 %v2618, %v2705
        %v2864 = vmul.f32 %v2624, %v2705
        %v2865 = vmul.f32 %v2630, %v2705
        %v2866 = vmul.f32 %v2636, %v2705
        %v2867 = vmul.f32 %v2642, %v2705
        %v2868 = vmul.f32 %v2648, %v2705
        %v2869 = vmul.f32 %v2654, %v2705
        %v2870 = vmul.f32 %v2660, %v2705
        %v2871 = vmul.f32 %v2666, %v2705
        %v2872 = vmul.f32 %v2672, %v2705
        %v2873 = vmul.f32 %v2678, %v2705
        %v2874 = vmul.f32 %v2684, %v2705
        %v2875 = vmul.f32 %v2690, %v2705
        %v2876 = vmul.f32 %v2696, %v2705
        %v2909 = vrot.slane %v2846, 7
        %v2910 = vsel %vm1333, %v2909, %v2845
        %v2911 = vrot.slane %v2847, 6
        %v2912 = vsel %vm1335, %v2911, %v2910
        %v2913 = vrot.slane %v2848, 5
        %v2914 = vsel %vm1337, %v2913, %v2912
        %v2915 = vrot.slane %v2849, 4
        %v2916 = vsel %vm1339, %v2915, %v2914
        %v2917 = vrot.slane %v2850, 3
        %v2918 = vsel %vm1341, %v2917, %v2916
        %v2919 = vrot.slane %v2851, 2
        %v2920 = vsel %vm1343, %v2919, %v2918
        %v2921 = vrot.slane %v2852, 1
        %v2922 = vsel %vm1345, %v2921, %v2920
        %v2923 = vrot.slane %v2854, 7
        %v2924 = vsel %vm1333, %v2923, %v2853
        %v2925 = vrot.slane %v2855, 6
        %v2926 = vsel %vm1335, %v2925, %v2924
        %v2927 = vrot.slane %v2856, 5
        %v2928 = vsel %vm1337, %v2927, %v2926
        %v2929 = vrot.slane %v2857, 4
        %v2930 = vsel %vm1339, %v2929, %v2928
        %v2931 = vrot.slane %v2858, 3
        %v2932 = vsel %vm1341, %v2931, %v2930
        %v2933 = vrot.slane %v2859, 2
        %v2934 = vsel %vm1343, %v2933, %v2932
        %v2935 = vrot.slane %v2860, 1
        %v2936 = vsel %vm1345, %v2935, %v2934
        %v2937 = vrot.slane %v2862, 7
        %v2938 = vsel %vm1333, %v2937, %v2861
        %v2939 = vrot.slane %v2863, 6
        %v2940 = vsel %vm1335, %v2939, %v2938
        %v2941 = vrot.slane %v2864, 5
        %v2942 = vsel %vm1337, %v2941, %v2940
        %v2943 = vrot.slane %v2865, 4
        %v2944 = vsel %vm1339, %v2943, %v2942
        %v2945 = vrot.slane %v2866, 3
        %v2946 = vsel %vm1341, %v2945, %v2944
        %v2947 = vrot.slane %v2867, 2
        %v2948 = vsel %vm1343, %v2947, %v2946
        %v2949 = vrot.slane %v2868, 1
        %v2950 = vsel %vm1345, %v2949, %v2948
        %v2951 = vrot.slane %v2870, 7
        %v2952 = vsel %vm1333, %v2951, %v2869
        %v2953 = vrot.slane %v2871, 6
        %v2954 = vsel %vm1335, %v2953, %v2952
        %v2955 = vrot.slane %v2872, 5
        %v2956 = vsel %vm1337, %v2955, %v2954
        %v2957 = vrot.slane %v2873, 4
        %v2958 = vsel %vm1339, %v2957, %v2956
        %v2959 = vrot.slane %v2874, 3
        %v2960 = vsel %vm1341, %v2959, %v2958
        %v2961 = vrot.slane %v2875, 2
        %v2962 = vsel %vm1343, %v2961, %v2960
        %v2963 = vrot.slane %v2876, 1
        %v2964 = vsel %vm1345, %v2963, %v2962
        %2969 = vadd.xlane.f32.xlu0 %v2922
        %v2970 = vpop.xlane.xlu0 %2969
        %2971 = vadd.xlane.f32.xlu0 %v2936
        %v2972 = vpop.xlane.xlu0 %2971
        %2973 = vadd.xlane.f32.xlu0 %v2950
        %v2974 = vpop.xlane.xlu0 %2973
        %2975 = vadd.xlane.f32.xlu0 %v2964
        %v2976 = vpop.xlane.xlu0 %2975
        %s2977 = sld [smem:[#allocation9 + $0x1]]
        %v2978 = vstv %s2977
        %v2979 = vadd.f32 %v2970, %v2978
        %v2980 = vadd.f32 %v2972, %v2978
        %v2981 = vadd.f32 %v2974, %v2978
        %v2982 = vadd.f32 %v2976, %v2978
        %v2983 = vmul.f32 %v2697, %v2705
        %v2984 = vmul.f32 %v2698, %v2705
        %v2985 = vmul.f32 %v2699, %v2705
        %v2986 = vmul.f32 %v2700, %v2705
        %2987 = vadd.xlane.f32.xlu0 %v2983
        %v2988 = vpop.xlane.xlu0 %2987
        %2989 = vadd.xlane.f32.xlu0 %v2984
        %v2990 = vpop.xlane.xlu0 %2989
        %2991 = vadd.xlane.f32.xlu0 %v2985
        %v2992 = vpop.xlane.xlu0 %2991
        %2993 = vadd.xlane.f32.xlu0 %v2986
        %v2994 = vpop.xlane.xlu0 %2993
        %s2995 = sld [smem:[#allocation9 + $0x2]]
        %v2996 = vstv %s2995
        %v2997 = vadd.f32 %v2988, %v2996
        %v2998 = vadd.f32 %v2990, %v2996
        %v2999 = vadd.f32 %v2992, %v2996
        %v3000 = vadd.f32 %v2994, %v2996
        %v3001 = vmax.f32 %v2841, %v2979
        %v3002 = vmax.f32 %v2842, %v2980
        %v3003 = vmax.f32 %v2843, %v2981
        %v3004 = vmax.f32 %v2844, %v2982
        %v3005 = vmax.f32 %v3001, %v2997
        %v3006 = vmax.f32 %v3002, %v2998
        %v3007 = vmax.f32 %v3003, %v2999
        %v3008 = vmax.f32 %v3004, %v3000
        %v3009 = vsub.f32 %v2841, %v3005
        %v3010 = vsub.f32 %v2842, %v3006
        %v3011 = vsub.f32 %v2843, %v3007
        %v3012 = vsub.f32 %v2844, %v3008
        %v3013 = vmul.f32 %v3009, 1.442695
        %v3014 = vpow.pop %v3013
        %v3015 = vmul.f32 %v3010, 1.442695
        %v3016 = vpow.pop %v3015
        %v3017 = vmul.f32 %v3011, 1.442695
        %v3018 = vpow.pop %v3017
        %v3019 = vmul.f32 %v3012, 1.442695
        %v3020 = vpow.pop %v3019
        %v3021 = vsub.f32 %v2979, %v3005
        %v3022 = vsub.f32 %v2980, %v3006
        %v3023 = vsub.f32 %v2981, %v3007
        %v3024 = vsub.f32 %v2982, %v3008
        %v3025 = vmul.f32 %v3021, 1.442695
        %v3026 = vpow.pop %v3025
        %v3027 = vmul.f32 %v3022, 1.442695
        %v3028 = vpow.pop %v3027
        %v3029 = vmul.f32 %v3023, 1.442695
        %v3030 = vpow.pop %v3029
        %v3031 = vmul.f32 %v3024, 1.442695
        %v3032 = vpow.pop %v3031
        %v3033 = vsub.f32 %v2997, %v3005
        %v3034 = vsub.f32 %v2998, %v3006
        %v3035 = vsub.f32 %v2999, %v3007
        %v3036 = vsub.f32 %v3000, %v3008
        %v3037 = vmul.f32 %v3033, 1.442695
        %v3038 = vpow.pop %v3037
        %v3039 = vmul.f32 %v3034, 1.442695
        %v3040 = vpow.pop %v3039
        %v3041 = vmul.f32 %v3035, 1.442695
        %v3042 = vpow.pop %v3041
        %v3043 = vmul.f32 %v3036, 1.442695
        %v3044 = vpow.pop %v3043
        %v3045 = vadd.f32 %v3014, %v3026
        %v3046 = vadd.f32 %v3016, %v3028
        %v3047 = vadd.f32 %v3018, %v3030
        %v3048 = vadd.f32 %v3020, %v3032
        %v3049 = vadd.f32 %v3045, %v3038
        %v3050 = vadd.f32 %v3046, %v3040
        %v3051 = vadd.f32 %v3047, %v3042
        %v3052 = vadd.f32 %v3048, %v3044
        %v3053 = vmul.f32 %v3038, %v2697
        %v3054 = vmul.f32 %v3040, %v2698
        %v3055 = vmul.f32 %v3042, %v2699
        %v3056 = vmul.f32 %v3044, %v2700
        %v3089 = vsel %vm1333, %v1700, %v1694
        %v3090 = vsel %vm1335, %v1706, %v3089
        %v3091 = vsel %vm1337, %v1712, %v3090
        %v3092 = vsel %vm1339, %v1718, %v3091
        %v3093 = vsel %vm1341, %v1724, %v3092
        %v3094 = vsel %vm1343, %v1730, %v3093
        %v3095 = vsel %vm1345, %v1736, %v3094
        %v3096 = vsel %vm1333, %v1748, %v1742
        %v3097 = vsel %vm1335, %v1754, %v3096
        %v3098 = vsel %vm1337, %v1760, %v3097
        %v3099 = vsel %vm1339, %v1766, %v3098
        %v3100 = vsel %vm1341, %v1772, %v3099
        %v3101 = vsel %vm1343, %v1778, %v3100
        %v3102 = vsel %vm1345, %v1784, %v3101
        %v3103 = vsel %vm1333, %v1796, %v1790
        %v3104 = vsel %vm1335, %v1802, %v3103
        %v3105 = vsel %vm1337, %v1808, %v3104
        %v3106 = vsel %vm1339, %v1814, %v3105
        %v3107 = vsel %vm1341, %v1820, %v3106
        %v3108 = vsel %vm1343, %v1826, %v3107
        %v3109 = vsel %vm1345, %v1832, %v3108
        %v3110 = vsel %vm1333, %v1844, %v1838
        %v3111 = vsel %vm1335, %v1850, %v3110
        %v3112 = vsel %vm1337, %v1856, %v3111
        %v3113 = vsel %vm1339, %v1862, %v3112
        %v3114 = vsel %vm1341, %v1868, %v3113
        %v3115 = vsel %vm1343, %v1874, %v3114
        %v3116 = vsel %vm1345, %v1880, %v3115
        %v3121 = vmul.f32 %v3014, %v3095
        %v3122 = vmul.f32 %v3016, %v3102
        %v3123 = vmul.f32 %v3018, %v3109
        %v3124 = vmul.f32 %v3020, %v3116
        %v3125 = vadd.f32 %v3053, %v3121
        %v3126 = vadd.f32 %v3054, %v3122
        %v3127 = vadd.f32 %v3055, %v3123
        %v3128 = vadd.f32 %v3056, %v3124
        %v3161 = vsel %vm1333, %v2516, %v2510
        %v3162 = vsel %vm1335, %v2522, %v3161
        %v3163 = vsel %vm1337, %v2528, %v3162
        %v3164 = vsel %vm1339, %v2534, %v3163
        %v3165 = vsel %vm1341, %v2540, %v3164
        %v3166 = vsel %vm1343, %v2546, %v3165
        %v3167 = vsel %vm1345, %v2552, %v3166
        %v3168 = vsel %vm1333, %v2564, %v2558
        %v3169 = vsel %vm1335, %v2570, %v3168
        %v3170 = vsel %vm1337, %v2576, %v3169
        %v3171 = vsel %vm1339, %v2582, %v3170
        %v3172 = vsel %vm1341, %v2588, %v3171
        %v3173 = vsel %vm1343, %v2594, %v3172
        %v3174 = vsel %vm1345, %v2600, %v3173
        %v3175 = vsel %vm1333, %v2612, %v2606
        %v3176 = vsel %vm1335, %v2618, %v3175
        %v3177 = vsel %vm1337, %v2624, %v3176
        %v3178 = vsel %vm1339, %v2630, %v3177
        %v3179 = vsel %vm1341, %v2636, %v3178
        %v3180 = vsel %vm1343, %v2642, %v3179
        %v3181 = vsel %vm1345, %v2648, %v3180
        %v3182 = vsel %vm1333, %v2660, %v2654
        %v3183 = vsel %vm1335, %v2666, %v3182
        %v3184 = vsel %vm1337, %v2672, %v3183
        %v3185 = vsel %vm1339, %v2678, %v3184
        %v3186 = vsel %vm1341, %v2684, %v3185
        %v3187 = vsel %vm1343, %v2690, %v3186
        %v3188 = vsel %vm1345, %v2696, %v3187
        %v3193 = vmul.f32 %v3026, %v3167
        %v3194 = vmul.f32 %v3028, %v3174
        %v3195 = vmul.f32 %v3030, %v3181
        %v3196 = vmul.f32 %v3032, %v3188
        %v3197 = vadd.f32 %v3125, %v3193
        %v3198 = vadd.f32 %v3126, %v3194
        %v3199 = vadd.f32 %v3127, %v3195
        %v3200 = vadd.f32 %v3128, %v3196
        %v3201 = vrcp.pop %v3049
        %v3202 = vmul.f32 %v3197, %v3201
        %v3203 = vrcp.pop %v3050
        %v3204 = vmul.f32 %v3198, %v3203
        %v3205 = vrcp.pop %v3051
        %v3206 = vmul.f32 %v3199, %v3205
        %v3207 = vrcp.pop %v3052
        %v3208 = vmul.f32 %v3200, %v3207
        %3209 = vst [vmem:[%s338] sm:$0xff] %v3202
        %3210 = vst [vmem:[%s338 + $0x8] sm:$0xff] %v3204
        %3211 = vst [vmem:[%s338 + $0x10] sm:$0xff] %v3206
        %3212 = vst [vmem:[%s338 + $0x18] sm:$0xff] %v3208
        %s3213 = sand.u32 %s171, 1
        %s3214 = scalar_lea.sflag [#allocation4], %s3213
        %s3215 = sand.u32 %s171, 1
        %s3216 = smul.addr %s3215, 32
        %s3217 = scalar_lea.vmem [#allocation10], %s3216
        // Predicated region
        $region61: #{tpu_custom_call.1} parent=43 // pred_check
          %p3218 = pneg %p181
        $region62: #{tpu_custom_call.1} parent=43 // pred_check_branch
          %3220 = sbr.rel (%p3218) target = $region64
        $region63: #{tpu_custom_call.1} parent=43 // pred_region
          %s3221 = smul.u32 4, %s27
          %s3223 = ssub.s32 512, 512
          %3224 = vsyncadd %s3214, %s3223
          %s3225 = smul.addr %s3221, 128
          %s3226 = scalar_lea.hbm %s6, %s3225
          %s3227 = sshll.u32 %s3217, 4
          %s3228 = int_to_ptr.vmem [resolvable:$true] %s3227
          %3233 = dma.vmem_to_hbm [thread:$0]  %s3228, 512, %s3226, %s3214, 128, 128, 8
        $region64: #{tpu_custom_call.1} parent=43 // pred_fallthru
          _
      $region44: #{tpu_custom_call.1} parent=5 // pred_fallthru
        _
      %p3234 = scmp.le.s32.totalorder 2, %s22
      // Predicated region
      $region65: #{tpu_custom_call.1} parent=5 // pred_check
        %p3235 = pneg %p3234
      $region66: #{tpu_custom_call.1} parent=5 // pred_check_branch
        %3237 = sbr.rel (%p3235) target = $region68
      $region67: #{tpu_custom_call.1} parent=5 // pred_region
        %s3238 = ssub.s32 %s22, 2
        // Predicated region
        $region69: #{tpu_custom_call.1} parent=67 // pred_check
          %p3239 = pneg %p187
        $region70: #{tpu_custom_call.1} parent=67 // pred_check_branch
          %3241 = sbr.rel (%p3239) target = $region72
        $region71: #{tpu_custom_call.1} parent=67 // pred_region
          %s3242 = sand.u32 %s172, 1
          %s3243 = scalar_lea.sflag [#allocation4], %s3242
          %s3244 = sand.u32 %s172, 1
          %s3245 = smul.addr %s3244, 32
          %s3246 = scalar_lea.vmem [#allocation10], %s3245
          %3247 = dma.done %s3243, 512
        $region72: #{tpu_custom_call.1} parent=67 // pred_fallthru
          _
      $region68: #{tpu_custom_call.1} parent=5 // pred_fallthru
        _
    $region6: #{tpu_custom_call.1} parent=1 // loop_footer
      %s26 = sadd.s32 1, %s22
    $region7: #{tpu_custom_call.1} parent=1 // loop_footer_branch
      %21 = sbr.rel target = $region3
    $region8: #{tpu_custom_call.1} parent=1 // loop_exit
      _
    %3248 = vsyncpa [#allocation3], 1
    %s3249 = scalar_lea.sflag [#allocation3], 1
    %3250 = vsyncpa %s3249, 1
    %3251 = vsyncpa [#allocation7], 1
    %s3252 = scalar_lea.sflag [#allocation7], 1
    %3253 = vsyncpa %s3252, 1
    %3254 = vsyncpa [#allocation4], 1
    %s3255 = scalar_lea.sflag [#allocation4], 1
    %3256 = vsyncpa %s3255, 1
    %3257 = vsyncpa [#allocation5], 1
    %s3258 = scalar_lea.sflag [#allocation5], 1
    %3259 = vsyncpa %s3258, 1

</llo_original>
